<compile_context>
chip_gen: v7x
topology: tpu7x:2x2x1
jax: 0.10.0
libtpu: 0.0.40
codegen_flags: <defaults>
</compile_context>

<pallas_src>
import functools

import jax
import jax.numpy as jnp
from jax.experimental import pallas as pl
from jax.experimental.pallas import tpu as pltpu

LEAKY_SLOPE = 0.01   # torch.nn.functional.leaky_relu / nn.LeakyReLU default
BN_EPS = 1e-5        # nn.BatchNorm1d default

# Row indices inside the packed per-feature parameter slab (shape (_VROWS, dim)).
_B1, _G1, _BE1, _B2, _G2, _BE2, _BF, _GF, _BEF, _WOUT = range(10)
_VROWS = 16          # 10 used rows, padded up to a sublane multiple of 8


def _bn_lrelu(h, gamma, beta, inv_n):
    """BatchNorm1d (train-mode stats over nodes, biased var) + LeakyReLU(0.01).

    Two-pass, mean-centered variance in f32 (robust against cancellation)."""
    mean = jnp.sum(h, axis=0, keepdims=True) * inv_n
    c = h - mean
    var = jnp.sum(c * c, axis=0, keepdims=True) * inv_n
    hn = c * jax.lax.rsqrt(var + BN_EPS) * gamma + beta
    return jnp.where(hn > 0, hn, LEAKY_SLOPE * hn)


def filtration_kernel(scal_ref,     # SMEM (4,)  f32 : [eps1, eps2, bout, pad]
                      x0_ref,       # VMEM (GB, N, 2*dim)   bf16  input node features
                      a_ref,        # VMEM (GB, N, N)       int8  dense adjacency A[dst, src]
                      wpack_ref,    # VMEM (7*dim, dim)     bf16  [w1; w2; wf0; wf1; wf2]
                      vec_ref,      # VMEM (_VROWS, dim)    f32   packed bias / BN / wout rows
                      out_ref,      # VMEM (GB, N, 1)       f32
                      cat_ref,      # VMEM scratch (N, 4*dim) bf16
                      *, dim, n_nodes, graphs_per_block):
    d = dim
    inv_n = 1.0 / n_nodes

    # Static sublane slices of the packed bf16 weight slab (no extra DMAs).
    w1 = wpack_ref[0:2 * d, :]                     # (2*dim, dim)   conv1 Linear
    w2 = wpack_ref[2 * d:3 * d, :]                 # (dim,   dim)   conv2 Linear
    wf = wpack_ref[3 * d:7 * d, :]                 # (4*dim, dim)   fc Linear (stacked)

    b1 = vec_ref[_B1:_B1 + 1, :]
    g1 = vec_ref[_G1:_G1 + 1, :]
    be1 = vec_ref[_BE1:_BE1 + 1, :]
    b2 = vec_ref[_B2:_B2 + 1, :]
    g2 = vec_ref[_G2:_G2 + 1, :]
    be2 = vec_ref[_BE2:_BE2 + 1, :]
    bf = vec_ref[_BF:_BF + 1, :]
    gf = vec_ref[_GF:_GF + 1, :]
    bef = vec_ref[_BEF:_BEF + 1, :]
    wout = vec_ref[_WOUT:_WOUT + 1, :]             # (1, dim) row of Linear(dim, 1)

    eps1 = scal_ref[0]
    eps2 = scal_ref[1]
    bout = scal_ref[2]

    # Small static loop over the graphs folded into this grid step; each graph is
    # fully independent (BN statistics are per forward call, i.e. per graph).
    for g in range(graphs_per_block):
        x0 = x0_ref[g]                                           # (N, 2*dim) bf16
        # int8 HBM storage -> bf16 MXU operand (upcast once, reused by both convs).
        a = a_ref[g].astype(jnp.float32).astype(jnp.bfloat16)    # (N, N)

        cat_ref[:, 0:2 * d] = x0                                 # fc-head concat, segment 0

        # --- GINConv 1 (reassociated): y = x0 @ W1 ; h = A @ y + (1+eps1)*y + b1 ---
        y = jnp.dot(x0, w1, preferred_element_type=jnp.float32)               # (N, dim)
        agg = jnp.dot(a, y.astype(jnp.bfloat16), preferred_element_type=jnp.float32)
        h = agg + (1.0 + eps1) * y + b1
        z1 = _bn_lrelu(h, g1, be1, inv_n)                        # f32
        z1_bf = z1.astype(jnp.bfloat16)
        cat_ref[:, 2 * d:3 * d] = z1_bf                          # fc-head concat, segment 1

        # --- GINConv 2 (same reassociated form) ---
        y = jnp.dot(z1_bf, w2, preferred_element_type=jnp.float32)
        agg = jnp.dot(a, y.astype(jnp.bfloat16), preferred_element_type=jnp.float32)
        h = agg + (1.0 + eps2) * y + b2
        z2 = _bn_lrelu(h, g2, be2, inv_n)
        cat_ref[:, 3 * d:4 * d] = z2.astype(jnp.bfloat16)        # fc-head concat, segment 2

        # --- fc head on cat([x0, z1, z2], dim=1): one K = 4*dim bf16 matmul ---
        h = jnp.dot(cat_ref[...], wf, preferred_element_type=jnp.float32) + bf
        h = _bn_lrelu(h, gf, bef, inv_n)

        # --- final Linear(dim, 1) + Sigmoid ---
        # VPU multiply + lane (XLU) reduction instead of an N x dim x 1 MXU pass;
        # exact sigmoid (filtration values may be sorted / compared downstream).
        logit = jnp.sum(h * wout, axis=-1, keepdims=True) + bout
        out_ref[g] = 1.0 / (1.0 + jnp.exp(-logit))


def _pack_params(params):
    """Pack the many small parameters into 1 weight slab, 1 vector slab, 1 SMEM array."""
    # Matmul weights are only ever used as bf16 MXU operands -> store as bf16.
    wpack = jnp.concatenate(
        [params["w1"], params["w2"],
         params["wf0"], params["wf1"], params["wf2"]], axis=0).astype(jnp.bfloat16)

    # Biases / BN affine / final projection row stay f32 (post-matmul math is f32).
    rows = jnp.concatenate(
        [params["b1"], params["g1"], params["be1"],
         params["b2"], params["g2"], params["be2"],
         params["bf1"], params["gf"], params["bef"],
         params["wout"].T], axis=0).astype(jnp.float32)          # (10, dim)
    vecs = jnp.pad(rows, ((0, _VROWS - rows.shape[0]), (0, 0)))  # (16, dim)

    scal = jnp.stack([
        jnp.asarray(params["eps1"], jnp.float32),
        jnp.asarray(params["eps2"], jnp.float32),
        jnp.asarray(params["bout"], jnp.float32).reshape(()),
        jnp.zeros((), jnp.float32),
    ])                                                           # (4,)
    return scal, wpack, vecs


def filtration_forward(params, node_deg, node_lab, edge_index, n_nodes,
                       graphs_per_block=1):
    """Batched forward.

    node_deg, node_lab: (G, N) int32 ; edge_index: (G, 2, E) int32.
    Each leading-axis entry is one independent forward pass of the module
    (one PyG batch); BatchNorm statistics are computed per graph, exactly as one
    `Filtration.forward` call does over its batch of nodes.  Returns (G, N).
    """
    dim = params["embed_deg"].shape[1]
    n_graphs = node_deg.shape[0]

    # Fold up to `graphs_per_block` graphs per grid step (amortizes per-step
    # overhead) while keeping an exact divisor so blocks tile the graph axis.
    gb = max(1, min(int(graphs_per_block), n_graphs))
    while n_graphs % gb:
        gb -= 1

    # ---------- plain-JAX glue: embedding gathers + dense adjacency ----------
    emb_deg = params["embed_deg"][node_deg]                      # (G, N, dim)
    emb_lab = params["embed_lab"][node_lab]                      # (G, N, dim)
    # x0 is only ever consumed as a bf16 MXU / concat operand -> ship it as bf16.
    x0 = jnp.concatenate([emb_deg, emb_lab], axis=-1).astype(jnp.bfloat16)   # (G, N, 2*dim)

    src, dst = edge_index[:, 0, :], edge_index[:, 1, :]          # (G, E)
    gidx = jnp.arange(n_graphs)[:, None]
    # A[g, dst, src] += 1  (GINConv default flow source -> target, aggr='add').
    # Scatter-add DIRECTLY into an int8 buffer: no f32 (G,N,N) HBM detour, and the
    # kernel-side A stream is 1 byte/entry (exact for edge multiplicities < 128).
    a = jnp.zeros((n_graphs, n_nodes, n_nodes), jnp.int8)
    a = a.at[gidx, dst, src].add(jnp.int8(1))

    scal, wpack, vecs = _pack_params(params)

    kernel = functools.partial(filtration_kernel, dim=dim, n_nodes=n_nodes,
                               graphs_per_block=gb)

    # Raise the scoped VMEM limit toward physical capacity so the whole-graph
    # fast path survives to larger N (conservative fallback: compiler default).
    try:
        vmem_limit = int(pltpu.get_tpu_info().vmem_capacity_bytes * 0.85)
    except Exception:  # pragma: no cover - older/mocked runtimes
        vmem_limit = None
    cp_kwargs = dict(dimension_semantics=("parallel",))          # graphs independent
    if vmem_limit is not None:
        cp_kwargs["vmem_limit_bytes"] = vmem_limit

    out = pl.pallas_call(
        kernel,
        out_shape=jax.ShapeDtypeStruct((n_graphs, n_nodes, 1), jnp.float32),
        grid_spec=pltpu.PrefetchScalarGridSpec(
            num_scalar_prefetch=0,
            grid=(n_graphs // gb,),
            in_specs=[
                pl.BlockSpec(memory_space=pltpu.MemorySpace.SMEM),               # scal (whole)
                pl.BlockSpec((gb, n_nodes, 2 * dim), lambda g: (g, 0, 0)),       # x0  (bf16)
                pl.BlockSpec((gb, n_nodes, n_nodes), lambda g: (g, 0, 0)),       # A   (int8)
                pl.BlockSpec((7 * dim, dim), lambda g: (0, 0)),                  # weights (resident)
                pl.BlockSpec((_VROWS, dim), lambda g: (0, 0)),                   # vectors (resident)
            ],
            out_specs=pl.BlockSpec((gb, n_nodes, 1), lambda g: (g, 0, 0)),
            scratch_shapes=[pltpu.VMEM((n_nodes, 4 * dim), jnp.bfloat16)],
        ),
        compiler_params=pltpu.CompilerParams(**cp_kwargs),
    )(scal, x0, a, wpack, vecs)

    return out[..., 0]                              # (G, N)  == per-graph .squeeze()


def filtration_reference(params, node_deg, node_lab, edge_index, n_nodes):
    """Pure-JAX f32 reference of the module forward (for correctness checking)."""
    x0 = jnp.concatenate([params["embed_deg"][node_deg],
                          params["embed_lab"][node_lab]], axis=-1)
    src, dst = edge_index[:, 0, :], edge_index[:, 1, :]
    gidx = jnp.arange(node_deg.shape[0])[:, None]
    a = jnp.zeros((node_deg.shape[0], n_nodes, n_nodes), jnp.float32)
    a = a.at[gidx, dst, src].add(1.0)

    def bn_lrelu(h, g, b):
        mean = jnp.mean(h, axis=1, keepdims=True)
        var = jnp.mean((h - mean) ** 2, axis=1, keepdims=True)
        hn = (h - mean) / jnp.sqrt(var + BN_EPS) * g + b
        return jnp.where(hn > 0, hn, LEAKY_SLOPE * hn)

    h = jnp.einsum("gij,gjf->gif", a, x0) + (1.0 + params["eps1"]) * x0
    z1 = bn_lrelu(h @ params["w1"] + params["b1"], params["g1"], params["be1"])
    h = jnp.einsum("gij,gjf->gif", a, z1) + (1.0 + params["eps2"]) * z1
    z2 = bn_lrelu(h @ params["w2"] + params["b2"], params["g2"], params["be2"])
    h = (x0 @ params["wf0"] + z1 @ params["wf1"] + z2 @ params["wf2"] + params["bf1"])
    h = bn_lrelu(h, params["gf"], params["bef"])
    return jax.nn.sigmoid(h @ params["wout"] + params["bout"])[..., 0]


def init_params(key, dim, max_node_deg, num_node_lab):
    """Deterministic synthetic parameter init (shapes match the nn.Module)."""
    dims = [2 * dim, dim, dim]            # [dim_input] + filt_conv_number*[dim]
    ks = jax.random.split(key, 16)
    u = lambda k, shape: jax.random.uniform(k, shape, jnp.float32, -0.1, 0.1)
    return {
        # nn.Embedding tables
        "embed_deg": u(ks[0], (max_node_deg + 1, dim)),
        "embed_lab": u(ks[1], (num_node_lab, dim)),
        # GINConv(train_eps=True) -> eps initialized to 0
        "eps1": 0.0, "eps2": 0.0,
        # conv MLPs: gin_mlp_type='lin' -> one Linear per conv (W stored as [in, out])
        "w1": u(ks[2], (dims[0], dims[1])), "b1": u(ks[3], (1, dims[1])),
        "w2": u(ks[4], (dims[1], dims[2])), "b2": u(ks[5], (1, dims[2])),
        # BatchNorm1d affine params per conv (gamma=1, beta=0 at init)
        "g1": jnp.ones((1, dims[1]), jnp.float32), "be1": jnp.zeros((1, dims[1]), jnp.float32),
        "g2": jnp.ones((1, dims[2]), jnp.float32), "be2": jnp.zeros((1, dims[2]), jnp.float32),
        # fc: Linear(sum(dims), dim) split along its input dim into [2*dim | dim | dim]
        "wf0": u(ks[6], (dims[0], dim)),
        "wf1": u(ks[7], (dims[1], dim)),
        "wf2": u(ks[8], (dims[2], dim)),
        "bf1": u(ks[9], (1, dim)),
        "gf": jnp.ones((1, dim), jnp.float32), "bef": jnp.zeros((1, dim), jnp.float32),
        # fc: Linear(dim, 1)
        "wout": u(ks[10], (dim, 1)), "bout": u(ks[11], (1, 1)),
    }


if __name__ == "__main__":
    G, N, dim = 4, 64, 32            # graphs per call, nodes per graph, filt_conv_dimension
    max_node_deg, num_node_lab = 8, 5
    E = 256                          # directed edges per graph
    GB = 2                           # graphs folded per grid step (grid = (2,) -> 2 TCs on v7x)

    key = jax.random.PRNGKey(0)
    k_deg, k_lab, k_src, k_dst, k_par = jax.random.split(key, 5)

    node_deg = jax.random.randint(k_deg, (G, N), 0, max_node_deg + 1)
    node_lab = jax.random.randint(k_lab, (G, N), 0, num_node_lab)
    edge_index = jnp.stack([jax.random.randint(k_src, (G, E), 0, N),
                            jax.random.randint(k_dst, (G, E), 0, N)], axis=1)   # (G, 2, E)

    params = init_params(k_par, dim, max_node_deg, num_node_lab)

    fwd = jax.jit(filtration_forward, static_argnums=(4, 5))
    ret = fwd(params, node_deg, node_lab, edge_index, N, GB)
    jax.block_until_ready(ret)

    assert ret.shape == (G, N)
    assert bool(jnp.all(jnp.isfinite(ret)))

    # Numerical check vs. pure-JAX f32 reference (bf16 operands / int8 adjacency
    # introduce only small error on sigmoid outputs in [0, 1]).
    ref = filtration_reference(params, node_deg, node_lab, edge_index, N)
    assert bool(jnp.allclose(ret, ref, atol=5e-2)), float(jnp.max(jnp.abs(ret - ref)))

    print("KERNEL_OK")
</pallas_src>

<mosaic_0001>
module attributes {stable_mosaic.version = 11 : i64} {
  func.func @filtration_kernel(%arg0: i32, %arg1: memref<4xf32, #tpu.memory_space<smem>>, %arg2: memref<2x64x64xbf16, #tpu.memory_space<vmem>>, %arg3: memref<2x64x64xi8, #tpu.memory_space<vmem>>, %arg4: memref<224x32xbf16, #tpu.memory_space<vmem>>, %arg5: memref<16x32xf32, #tpu.memory_space<vmem>>, %arg6: memref<2x64x1xf32, #tpu.memory_space<vmem>>, %arg7: memref<64x128xbf16, #tpu.memory_space<vmem>>) attributes {dimension_semantics = [#tpu.dimension_semantics<parallel>], iteration_bounds = array<i64: 2>, scalar_prefetch = 0 : i64, scratch_operands = 1 : i64, tpu.core_type = #tpu.core_type<tc>, window_params = [{transform_indices = @transform_0, window_bounds = array<i64: 4>}, {transform_indices = @transform_1, window_bounds = array<i64: 2, 64, 64>}, {transform_indices = @transform_2, window_bounds = array<i64: 2, 64, 64>}, {pipeline_mode = #tpu.pipeline_mode<synchronous>, transform_indices = @transform_3, window_bounds = array<i64: 224, 32>}, {pipeline_mode = #tpu.pipeline_mode<synchronous>, transform_indices = @transform_4, window_bounds = array<i64: 16, 32>}, {transform_indices = @transform_5, window_bounds = array<i64: 2, 64, 1>}]} {
    %c0 = arith.constant 0 : index
    %c0_0 = arith.constant 0 : index
    %0 = vector.load %arg4[%c0, %c0_0] : memref<224x32xbf16, #tpu.memory_space<vmem>>, vector<64x32xbf16>
    %c64 = arith.constant 64 : index
    %c0_1 = arith.constant 0 : index
    %1 = vector.load %arg4[%c64, %c0_1] : memref<224x32xbf16, #tpu.memory_space<vmem>>, vector<32x32xbf16>
    %c96 = arith.constant 96 : index
    %c0_2 = arith.constant 0 : index
    %2 = vector.load %arg4[%c96, %c0_2] : memref<224x32xbf16, #tpu.memory_space<vmem>>, vector<128x32xbf16>
    %c0_3 = arith.constant 0 : index
    %c0_4 = arith.constant 0 : index
    %3 = vector.load %arg5[%c0_3, %c0_4] : memref<16x32xf32, #tpu.memory_space<vmem>>, vector<1x32xf32>
    %c1 = arith.constant 1 : index
    %c0_5 = arith.constant 0 : index
    %4 = vector.load %arg5[%c1, %c0_5] : memref<16x32xf32, #tpu.memory_space<vmem>>, vector<1x32xf32>
    %c2 = arith.constant 2 : index
    %c0_6 = arith.constant 0 : index
    %5 = vector.load %arg5[%c2, %c0_6] : memref<16x32xf32, #tpu.memory_space<vmem>>, vector<1x32xf32>
    %c3 = arith.constant 3 : index
    %c0_7 = arith.constant 0 : index
    %6 = vector.load %arg5[%c3, %c0_7] : memref<16x32xf32, #tpu.memory_space<vmem>>, vector<1x32xf32>
    %c4 = arith.constant 4 : index
    %c0_8 = arith.constant 0 : index
    %7 = vector.load %arg5[%c4, %c0_8] : memref<16x32xf32, #tpu.memory_space<vmem>>, vector<1x32xf32>
    %c5 = arith.constant 5 : index
    %c0_9 = arith.constant 0 : index
    %8 = vector.load %arg5[%c5, %c0_9] : memref<16x32xf32, #tpu.memory_space<vmem>>, vector<1x32xf32>
    %c6 = arith.constant 6 : index
    %c0_10 = arith.constant 0 : index
    %9 = vector.load %arg5[%c6, %c0_10] : memref<16x32xf32, #tpu.memory_space<vmem>>, vector<1x32xf32>
    %c7 = arith.constant 7 : index
    %c0_11 = arith.constant 0 : index
    %10 = vector.load %arg5[%c7, %c0_11] : memref<16x32xf32, #tpu.memory_space<vmem>>, vector<1x32xf32>
    %c8 = arith.constant 8 : index
    %c0_12 = arith.constant 0 : index
    %11 = vector.load %arg5[%c8, %c0_12] : memref<16x32xf32, #tpu.memory_space<vmem>>, vector<1x32xf32>
    %c9 = arith.constant 9 : index
    %c0_13 = arith.constant 0 : index
    %12 = vector.load %arg5[%c9, %c0_13] : memref<16x32xf32, #tpu.memory_space<vmem>>, vector<1x32xf32>
    %c0_14 = arith.constant 0 : index
    %13 = memref.load %arg1[%c0_14] : memref<4xf32, #tpu.memory_space<smem>>
    %c1_15 = arith.constant 1 : index
    %14 = memref.load %arg1[%c1_15] : memref<4xf32, #tpu.memory_space<smem>>
    %c2_16 = arith.constant 2 : index
    %15 = memref.load %arg1[%c2_16] : memref<4xf32, #tpu.memory_space<smem>>
    %c0_17 = arith.constant 0 : index
    %c0_18 = arith.constant 0 : index
    %c0_19 = arith.constant 0 : index
    %16 = vector.load %arg2[%c0_17, %c0_18, %c0_19] : memref<2x64x64xbf16, #tpu.memory_space<vmem>>, vector<1x64x64xbf16>
    %17 = vector.shape_cast %16 : vector<1x64x64xbf16> to vector<64x64xbf16>
    %c0_20 = arith.constant 0 : index
    %c0_21 = arith.constant 0 : index
    %c0_22 = arith.constant 0 : index
    %18 = vector.load %arg3[%c0_20, %c0_21, %c0_22] : memref<2x64x64xi8, #tpu.memory_space<vmem>>, vector<1x64x64xi8>
    %19 = vector.shape_cast %18 : vector<1x64x64xi8> to vector<64x64xi8>
    %20 = arith.sitofp %19 : vector<64x64xi8> to vector<64x64xf32>
    %21 = arith.truncf %20 : vector<64x64xf32> to vector<64x64xbf16>
    %c0_23 = arith.constant 0 : index
    %c0_24 = arith.constant 0 : index
    %22 = vector.load %arg7[%c0_23, %c0_24] : memref<64x128xbf16, #tpu.memory_space<vmem>>, vector<64x64xbf16>
    tpu.vector_store %arg7[%c0_23, %c0_24], %17 {strides = array<i32>} : memref<64x128xbf16, #tpu.memory_space<vmem>>, vector<64x64xbf16>,
    %cst = arith.constant dense<0.000000e+00> : vector<64x32xf32>
    %23 = tpu.matmul %17, %0, %cst {dimension_numbers = #tpu.dot_dimension_numbers<[1], [0], [0], [1], [0, 0, 1, 1], [], []>} : vector<64x64xbf16>, vector<64x32xbf16>, vector<64x32xf32> -> vector<64x32xf32>
    %24 = arith.truncf %23 : vector<64x32xf32> to vector<64x32xbf16>
    %cst_25 = arith.constant dense<0.000000e+00> : vector<64x32xf32>
    %25 = tpu.matmul %21, %24, %cst_25 {dimension_numbers = #tpu.dot_dimension_numbers<[1], [0], [0], [1], [0, 0, 1, 1], [], []>} : vector<64x64xbf16>, vector<64x32xbf16>, vector<64x32xf32> -> vector<64x32xf32>
    %cst_26 = arith.constant 1.000000e+00 : f32
    %26 = arith.addf %cst_26, %13 : f32
    %27 = vector.broadcast %26 : f32 to vector<64x32xf32>
    %28 = arith.mulf %27, %23 : vector<64x32xf32>
    %29 = arith.addf %25, %28 : vector<64x32xf32>
    %30 = vector.broadcast %3 : vector<1x32xf32> to vector<64x32xf32>
    %31 = arith.addf %29, %30 : vector<64x32xf32>
    %cst_27 = arith.constant dense<0.000000e+00> : vector<32xf32>
    %32 = vector.multi_reduction <add>, %31, %cst_27 [0] : vector<64x32xf32> to vector<32xf32>
    %33 = vector.shape_cast %32 : vector<32xf32> to vector<1x32xf32>
    %cst_28 = arith.constant 1.562500e-02 : f32
    %34 = vector.broadcast %cst_28 : f32 to vector<1x32xf32>
    %35 = arith.mulf %33, %34 : vector<1x32xf32>
    %36 = vector.broadcast %35 : vector<1x32xf32> to vector<64x32xf32>
    %37 = arith.subf %31, %36 : vector<64x32xf32>
    %38 = arith.mulf %37, %37 : vector<64x32xf32>
    %cst_29 = arith.constant dense<0.000000e+00> : vector<32xf32>
    %39 = vector.multi_reduction <add>, %38, %cst_29 [0] : vector<64x32xf32> to vector<32xf32>
    %40 = vector.shape_cast %39 : vector<32xf32> to vector<1x32xf32>
    %cst_30 = arith.constant 1.562500e-02 : f32
    %41 = vector.broadcast %cst_30 : f32 to vector<1x32xf32>
    %42 = arith.mulf %40, %41 : vector<1x32xf32>
    %cst_31 = arith.constant 9.99999974E-6 : f32
    %43 = vector.broadcast %cst_31 : f32 to vector<1x32xf32>
    %44 = arith.addf %42, %43 : vector<1x32xf32>
    %45 = math.rsqrt %44 : vector<1x32xf32>
    %46 = vector.broadcast %45 : vector<1x32xf32> to vector<64x32xf32>
    %47 = arith.mulf %37, %46 : vector<64x32xf32>
    %48 = vector.broadcast %4 : vector<1x32xf32> to vector<64x32xf32>
    %49 = arith.mulf %47, %48 : vector<64x32xf32>
    %50 = vector.broadcast %5 : vector<1x32xf32> to vector<64x32xf32>
    %51 = arith.addf %49, %50 : vector<64x32xf32>
    %cst_32 = arith.constant 0.000000e+00 : f32
    %52 = vector.broadcast %cst_32 : f32 to vector<64x32xf32>
    %53 = arith.cmpf ogt, %51, %52 : vector<64x32xf32>
    %cst_33 = arith.constant 0.00999999977 : f32
    %54 = vector.broadcast %cst_33 : f32 to vector<64x32xf32>
    %55 = arith.mulf %54, %51 : vector<64x32xf32>
    %56 = arith.select %53, %51, %55 : vector<64x32xi1>, vector<64x32xf32>
    %57 = arith.truncf %56 : vector<64x32xf32> to vector<64x32xbf16>
    %c0_34 = arith.constant 0 : index
    %c64_35 = arith.constant 64 : index
    %58 = vector.load %arg7[%c0_34, %c64_35] : memref<64x128xbf16, #tpu.memory_space<vmem>>, vector<64x32xbf16>
    tpu.vector_store %arg7[%c0_34, %c64_35], %57 {strides = array<i32>} : memref<64x128xbf16, #tpu.memory_space<vmem>>, vector<64x32xbf16>,
    %cst_36 = arith.constant dense<0.000000e+00> : vector<64x32xf32>
    %59 = tpu.matmul %57, %1, %cst_36 {dimension_numbers = #tpu.dot_dimension_numbers<[1], [0], [0], [1], [0, 0, 1, 1], [], []>} : vector<64x32xbf16>, vector<32x32xbf16>, vector<64x32xf32> -> vector<64x32xf32>
    %60 = arith.truncf %59 : vector<64x32xf32> to vector<64x32xbf16>
    %cst_37 = arith.constant dense<0.000000e+00> : vector<64x32xf32>
    %61 = tpu.matmul %21, %60, %cst_37 {dimension_numbers = #tpu.dot_dimension_numbers<[1], [0], [0], [1], [0, 0, 1, 1], [], []>} : vector<64x64xbf16>, vector<64x32xbf16>, vector<64x32xf32> -> vector<64x32xf32>
    %cst_38 = arith.constant 1.000000e+00 : f32
    %62 = arith.addf %cst_38, %14 : f32
    %63 = vector.broadcast %62 : f32 to vector<64x32xf32>
    %64 = arith.mulf %63, %59 : vector<64x32xf32>
    %65 = arith.addf %61, %64 : vector<64x32xf32>
    %66 = vector.broadcast %6 : vector<1x32xf32> to vector<64x32xf32>
    %67 = arith.addf %65, %66 : vector<64x32xf32>
    %cst_39 = arith.constant dense<0.000000e+00> : vector<32xf32>
    %68 = vector.multi_reduction <add>, %67, %cst_39 [0] : vector<64x32xf32> to vector<32xf32>
    %69 = vector.shape_cast %68 : vector<32xf32> to vector<1x32xf32>
    %cst_40 = arith.constant 1.562500e-02 : f32
    %70 = vector.broadcast %cst_40 : f32 to vector<1x32xf32>
    %71 = arith.mulf %69, %70 : vector<1x32xf32>
    %72 = vector.broadcast %71 : vector<1x32xf32> to vector<64x32xf32>
    %73 = arith.subf %67, %72 : vector<64x32xf32>
    %74 = arith.mulf %73, %73 : vector<64x32xf32>
    %cst_41 = arith.constant dense<0.000000e+00> : vector<32xf32>
    %75 = vector.multi_reduction <add>, %74, %cst_41 [0] : vector<64x32xf32> to vector<32xf32>
    %76 = vector.shape_cast %75 : vector<32xf32> to vector<1x32xf32>
    %cst_42 = arith.constant 1.562500e-02 : f32
    %77 = vector.broadcast %cst_42 : f32 to vector<1x32xf32>
    %78 = arith.mulf %76, %77 : vector<1x32xf32>
    %cst_43 = arith.constant 9.99999974E-6 : f32
    %79 = vector.broadcast %cst_43 : f32 to vector<1x32xf32>
    %80 = arith.addf %78, %79 : vector<1x32xf32>
    %81 = math.rsqrt %80 : vector<1x32xf32>
    %82 = vector.broadcast %81 : vector<1x32xf32> to vector<64x32xf32>
    %83 = arith.mulf %73, %82 : vector<64x32xf32>
    %84 = vector.broadcast %7 : vector<1x32xf32> to vector<64x32xf32>
    %85 = arith.mulf %83, %84 : vector<64x32xf32>
    %86 = vector.broadcast %8 : vector<1x32xf32> to vector<64x32xf32>
    %87 = arith.addf %85, %86 : vector<64x32xf32>
    %cst_44 = arith.constant 0.000000e+00 : f32
    %88 = vector.broadcast %cst_44 : f32 to vector<64x32xf32>
    %89 = arith.cmpf ogt, %87, %88 : vector<64x32xf32>
    %cst_45 = arith.constant 0.00999999977 : f32
    %90 = vector.broadcast %cst_45 : f32 to vector<64x32xf32>
    %91 = arith.mulf %90, %87 : vector<64x32xf32>
    %92 = arith.select %89, %87, %91 : vector<64x32xi1>, vector<64x32xf32>
    %93 = arith.truncf %92 : vector<64x32xf32> to vector<64x32xbf16>
    %c0_46 = arith.constant 0 : index
    %c96_47 = arith.constant 96 : index
    %94 = vector.load %arg7[%c0_46, %c96_47] : memref<64x128xbf16, #tpu.memory_space<vmem>>, vector<64x32xbf16>
    tpu.vector_store %arg7[%c0_46, %c96_47], %93 {strides = array<i32>} : memref<64x128xbf16, #tpu.memory_space<vmem>>, vector<64x32xbf16>,
    %c0_48 = arith.constant 0 : index
    %c0_49 = arith.constant 0 : index
    %95 = vector.load %arg7[%c0_48, %c0_49] : memref<64x128xbf16, #tpu.memory_space<vmem>>, vector<64x128xbf16>
    %cst_50 = arith.constant dense<0.000000e+00> : vector<64x32xf32>
    %96 = tpu.matmul %95, %2, %cst_50 {dimension_numbers = #tpu.dot_dimension_numbers<[1], [0], [0], [1], [0, 0, 1, 1], [], []>} : vector<64x128xbf16>, vector<128x32xbf16>, vector<64x32xf32> -> vector<64x32xf32>
    %97 = vector.broadcast %9 : vector<1x32xf32> to vector<64x32xf32>
    %98 = arith.addf %96, %97 : vector<64x32xf32>
    %cst_51 = arith.constant dense<0.000000e+00> : vector<32xf32>
    %99 = vector.multi_reduction <add>, %98, %cst_51 [0] : vector<64x32xf32> to vector<32xf32>
    %100 = vector.shape_cast %99 : vector<32xf32> to vector<1x32xf32>
    %cst_52 = arith.constant 1.562500e-02 : f32
    %101 = vector.broadcast %cst_52 : f32 to vector<1x32xf32>
    %102 = arith.mulf %100, %101 : vector<1x32xf32>
    %103 = vector.broadcast %102 : vector<1x32xf32> to vector<64x32xf32>
    %104 = arith.subf %98, %103 : vector<64x32xf32>
    %105 = arith.mulf %104, %104 : vector<64x32xf32>
    %cst_53 = arith.constant dense<0.000000e+00> : vector<32xf32>
    %106 = vector.multi_reduction <add>, %105, %cst_53 [0] : vector<64x32xf32> to vector<32xf32>
    %107 = vector.shape_cast %106 : vector<32xf32> to vector<1x32xf32>
    %cst_54 = arith.constant 1.562500e-02 : f32
    %108 = vector.broadcast %cst_54 : f32 to vector<1x32xf32>
    %109 = arith.mulf %107, %108 : vector<1x32xf32>
    %cst_55 = arith.constant 9.99999974E-6 : f32
    %110 = vector.broadcast %cst_55 : f32 to vector<1x32xf32>
    %111 = arith.addf %109, %110 : vector<1x32xf32>
    %112 = math.rsqrt %111 : vector<1x32xf32>
    %113 = vector.broadcast %112 : vector<1x32xf32> to vector<64x32xf32>
    %114 = arith.mulf %104, %113 : vector<64x32xf32>
    %115 = vector.broadcast %10 : vector<1x32xf32> to vector<64x32xf32>
    %116 = arith.mulf %114, %115 : vector<64x32xf32>
    %117 = vector.broadcast %11 : vector<1x32xf32> to vector<64x32xf32>
    %118 = arith.addf %116, %117 : vector<64x32xf32>
    %cst_56 = arith.constant 0.000000e+00 : f32
    %119 = vector.broadcast %cst_56 : f32 to vector<64x32xf32>
    %120 = arith.cmpf ogt, %118, %119 : vector<64x32xf32>
    %cst_57 = arith.constant 0.00999999977 : f32
    %121 = vector.broadcast %cst_57 : f32 to vector<64x32xf32>
    %122 = arith.mulf %121, %118 : vector<64x32xf32>
    %123 = arith.select %120, %118, %122 : vector<64x32xi1>, vector<64x32xf32>
    %124 = vector.broadcast %12 : vector<1x32xf32> to vector<64x32xf32>
    %125 = arith.mulf %123, %124 : vector<64x32xf32>
    %cst_58 = arith.constant dense<0.000000e+00> : vector<64xf32>
    %126 = vector.multi_reduction <add>, %125, %cst_58 [1] : vector<64x32xf32> to vector<64xf32>
    %127 = vector.shape_cast %126 : vector<64xf32> to vector<64x1xf32>
    %128 = vector.broadcast %15 : f32 to vector<64x1xf32>
    %129 = arith.addf %127, %128 : vector<64x1xf32>
    %cst_59 = arith.constant 0.000000e+00 : f32
    %130 = vector.broadcast %cst_59 : f32 to vector<64x1xf32>
    %131 = arith.subf %130, %129 : vector<64x1xf32>
    %132 = math.exp %131 : vector<64x1xf32>
    %cst_60 = arith.constant 1.000000e+00 : f32
    %133 = vector.broadcast %cst_60 : f32 to vector<64x1xf32>
    %134 = arith.addf %133, %132 : vector<64x1xf32>
    %cst_61 = arith.constant 1.000000e+00 : f32
    %135 = vector.broadcast %cst_61 : f32 to vector<64x1xf32>
    %136 = arith.divf %135, %134 : vector<64x1xf32>
    %c0_62 = arith.constant 0 : index
    %c0_63 = arith.constant 0 : index
    %c0_64 = arith.constant 0 : index
    %137 = vector.load %arg6[%c0_62, %c0_63, %c0_64] : memref<2x64x1xf32, #tpu.memory_space<vmem>>, vector<1x64x1xf32>
    %138 = vector.shape_cast %137 : vector<1x64x1xf32> to vector<64x1xf32>
    %139 = vector.shape_cast %136 : vector<64x1xf32> to vector<1x64x1xf32>
    tpu.vector_store %arg6[%c0_62, %c0_63, %c0_64], %139 {strides = array<i32>} : memref<2x64x1xf32, #tpu.memory_space<vmem>>, vector<1x64x1xf32>,
    %c1_65 = arith.constant 1 : index
    %c0_66 = arith.constant 0 : index
    %c0_67 = arith.constant 0 : index
    %140 = vector.load %arg2[%c1_65, %c0_66, %c0_67] : memref<2x64x64xbf16, #tpu.memory_space<vmem>>, vector<1x64x64xbf16>
    %141 = vector.shape_cast %140 : vector<1x64x64xbf16> to vector<64x64xbf16>
    %c1_68 = arith.constant 1 : index
    %c0_69 = arith.constant 0 : index
    %c0_70 = arith.constant 0 : index
    %142 = vector.load %arg3[%c1_68, %c0_69, %c0_70] : memref<2x64x64xi8, #tpu.memory_space<vmem>>, vector<1x64x64xi8>
    %143 = vector.shape_cast %142 : vector<1x64x64xi8> to vector<64x64xi8>
    %144 = arith.sitofp %143 : vector<64x64xi8> to vector<64x64xf32>
    %145 = arith.truncf %144 : vector<64x64xf32> to vector<64x64xbf16>
    %c0_71 = arith.constant 0 : index
    %c0_72 = arith.constant 0 : index
    %146 = vector.load %arg7[%c0_71, %c0_72] : memref<64x128xbf16, #tpu.memory_space<vmem>>, vector<64x64xbf16>
    tpu.vector_store %arg7[%c0_71, %c0_72], %141 {strides = array<i32>} : memref<64x128xbf16, #tpu.memory_space<vmem>>, vector<64x64xbf16>,
    %cst_73 = arith.constant dense<0.000000e+00> : vector<64x32xf32>
    %147 = tpu.matmul %141, %0, %cst_73 {dimension_numbers = #tpu.dot_dimension_numbers<[1], [0], [0], [1], [0, 0, 1, 1], [], []>} : vector<64x64xbf16>, vector<64x32xbf16>, vector<64x32xf32> -> vector<64x32xf32>
    %148 = arith.truncf %147 : vector<64x32xf32> to vector<64x32xbf16>
    %cst_74 = arith.constant dense<0.000000e+00> : vector<64x32xf32>
    %149 = tpu.matmul %145, %148, %cst_74 {dimension_numbers = #tpu.dot_dimension_numbers<[1], [0], [0], [1], [0, 0, 1, 1], [], []>} : vector<64x64xbf16>, vector<64x32xbf16>, vector<64x32xf32> -> vector<64x32xf32>
    %cst_75 = arith.constant 1.000000e+00 : f32
    %150 = arith.addf %cst_75, %13 : f32
    %151 = vector.broadcast %150 : f32 to vector<64x32xf32>
    %152 = arith.mulf %151, %147 : vector<64x32xf32>
    %153 = arith.addf %149, %152 : vector<64x32xf32>
    %154 = vector.broadcast %3 : vector<1x32xf32> to vector<64x32xf32>
    %155 = arith.addf %153, %154 : vector<64x32xf32>
    %cst_76 = arith.constant dense<0.000000e+00> : vector<32xf32>
    %156 = vector.multi_reduction <add>, %155, %cst_76 [0] : vector<64x32xf32> to vector<32xf32>
    %157 = vector.shape_cast %156 : vector<32xf32> to vector<1x32xf32>
    %cst_77 = arith.constant 1.562500e-02 : f32
    %158 = vector.broadcast %cst_77 : f32 to vector<1x32xf32>
    %159 = arith.mulf %157, %158 : vector<1x32xf32>
    %160 = vector.broadcast %159 : vector<1x32xf32> to vector<64x32xf32>
    %161 = arith.subf %155, %160 : vector<64x32xf32>
    %162 = arith.mulf %161, %161 : vector<64x32xf32>
    %cst_78 = arith.constant dense<0.000000e+00> : vector<32xf32>
    %163 = vector.multi_reduction <add>, %162, %cst_78 [0] : vector<64x32xf32> to vector<32xf32>
    %164 = vector.shape_cast %163 : vector<32xf32> to vector<1x32xf32>
    %cst_79 = arith.constant 1.562500e-02 : f32
    %165 = vector.broadcast %cst_79 : f32 to vector<1x32xf32>
    %166 = arith.mulf %164, %165 : vector<1x32xf32>
    %cst_80 = arith.constant 9.99999974E-6 : f32
    %167 = vector.broadcast %cst_80 : f32 to vector<1x32xf32>
    %168 = arith.addf %166, %167 : vector<1x32xf32>
    %169 = math.rsqrt %168 : vector<1x32xf32>
    %170 = vector.broadcast %169 : vector<1x32xf32> to vector<64x32xf32>
    %171 = arith.mulf %161, %170 : vector<64x32xf32>
    %172 = vector.broadcast %4 : vector<1x32xf32> to vector<64x32xf32>
    %173 = arith.mulf %171, %172 : vector<64x32xf32>
    %174 = vector.broadcast %5 : vector<1x32xf32> to vector<64x32xf32>
    %175 = arith.addf %173, %174 : vector<64x32xf32>
    %cst_81 = arith.constant 0.000000e+00 : f32
    %176 = vector.broadcast %cst_81 : f32 to vector<64x32xf32>
    %177 = arith.cmpf ogt, %175, %176 : vector<64x32xf32>
    %cst_82 = arith.constant 0.00999999977 : f32
    %178 = vector.broadcast %cst_82 : f32 to vector<64x32xf32>
    %179 = arith.mulf %178, %175 : vector<64x32xf32>
    %180 = arith.select %177, %175, %179 : vector<64x32xi1>, vector<64x32xf32>
    %181 = arith.truncf %180 : vector<64x32xf32> to vector<64x32xbf16>
    %c0_83 = arith.constant 0 : index
    %c64_84 = arith.constant 64 : index
    %182 = vector.load %arg7[%c0_83, %c64_84] : memref<64x128xbf16, #tpu.memory_space<vmem>>, vector<64x32xbf16>
    tpu.vector_store %arg7[%c0_83, %c64_84], %181 {strides = array<i32>} : memref<64x128xbf16, #tpu.memory_space<vmem>>, vector<64x32xbf16>,
    %cst_85 = arith.constant dense<0.000000e+00> : vector<64x32xf32>
    %183 = tpu.matmul %181, %1, %cst_85 {dimension_numbers = #tpu.dot_dimension_numbers<[1], [0], [0], [1], [0, 0, 1, 1], [], []>} : vector<64x32xbf16>, vector<32x32xbf16>, vector<64x32xf32> -> vector<64x32xf32>
    %184 = arith.truncf %183 : vector<64x32xf32> to vector<64x32xbf16>
    %cst_86 = arith.constant dense<0.000000e+00> : vector<64x32xf32>
    %185 = tpu.matmul %145, %184, %cst_86 {dimension_numbers = #tpu.dot_dimension_numbers<[1], [0], [0], [1], [0, 0, 1, 1], [], []>} : vector<64x64xbf16>, vector<64x32xbf16>, vector<64x32xf32> -> vector<64x32xf32>
    %cst_87 = arith.constant 1.000000e+00 : f32
    %186 = arith.addf %cst_87, %14 : f32
    %187 = vector.broadcast %186 : f32 to vector<64x32xf32>
    %188 = arith.mulf %187, %183 : vector<64x32xf32>
    %189 = arith.addf %185, %188 : vector<64x32xf32>
    %190 = vector.broadcast %6 : vector<1x32xf32> to vector<64x32xf32>
    %191 = arith.addf %189, %190 : vector<64x32xf32>
    %cst_88 = arith.constant dense<0.000000e+00> : vector<32xf32>
    %192 = vector.multi_reduction <add>, %191, %cst_88 [0] : vector<64x32xf32> to vector<32xf32>
    %193 = vector.shape_cast %192 : vector<32xf32> to vector<1x32xf32>
    %cst_89 = arith.constant 1.562500e-02 : f32
    %194 = vector.broadcast %cst_89 : f32 to vector<1x32xf32>
    %195 = arith.mulf %193, %194 : vector<1x32xf32>
    %196 = vector.broadcast %195 : vector<1x32xf32> to vector<64x32xf32>
    %197 = arith.subf %191, %196 : vector<64x32xf32>
    %198 = arith.mulf %197, %197 : vector<64x32xf32>
    %cst_90 = arith.constant dense<0.000000e+00> : vector<32xf32>
    %199 = vector.multi_reduction <add>, %198, %cst_90 [0] : vector<64x32xf32> to vector<32xf32>
    %200 = vector.shape_cast %199 : vector<32xf32> to vector<1x32xf32>
    %cst_91 = arith.constant 1.562500e-02 : f32
    %201 = vector.broadcast %cst_91 : f32 to vector<1x32xf32>
    %202 = arith.mulf %200, %201 : vector<1x32xf32>
    %cst_92 = arith.constant 9.99999974E-6 : f32
    %203 = vector.broadcast %cst_92 : f32 to vector<1x32xf32>
    %204 = arith.addf %202, %203 : vector<1x32xf32>
    %205 = math.rsqrt %204 : vector<1x32xf32>
    %206 = vector.broadcast %205 : vector<1x32xf32> to vector<64x32xf32>
    %207 = arith.mulf %197, %206 : vector<64x32xf32>
    %208 = vector.broadcast %7 : vector<1x32xf32> to vector<64x32xf32>
    %209 = arith.mulf %207, %208 : vector<64x32xf32>
    %210 = vector.broadcast %8 : vector<1x32xf32> to vector<64x32xf32>
    %211 = arith.addf %209, %210 : vector<64x32xf32>
    %cst_93 = arith.constant 0.000000e+00 : f32
    %212 = vector.broadcast %cst_93 : f32 to vector<64x32xf32>
    %213 = arith.cmpf ogt, %211, %212 : vector<64x32xf32>
    %cst_94 = arith.constant 0.00999999977 : f32
    %214 = vector.broadcast %cst_94 : f32 to vector<64x32xf32>
    %215 = arith.mulf %214, %211 : vector<64x32xf32>
    %216 = arith.select %213, %211, %215 : vector<64x32xi1>, vector<64x32xf32>
    %217 = arith.truncf %216 : vector<64x32xf32> to vector<64x32xbf16>
    %c0_95 = arith.constant 0 : index
    %c96_96 = arith.constant 96 : index
    %218 = vector.load %arg7[%c0_95, %c96_96] : memref<64x128xbf16, #tpu.memory_space<vmem>>, vector<64x32xbf16>
    tpu.vector_store %arg7[%c0_95, %c96_96], %217 {strides = array<i32>} : memref<64x128xbf16, #tpu.memory_space<vmem>>, vector<64x32xbf16>,
    %c0_97 = arith.constant 0 : index
    %c0_98 = arith.constant 0 : index
    %219 = vector.load %arg7[%c0_97, %c0_98] : memref<64x128xbf16, #tpu.memory_space<vmem>>, vector<64x128xbf16>
    %cst_99 = arith.constant dense<0.000000e+00> : vector<64x32xf32>
    %220 = tpu.matmul %219, %2, %cst_99 {dimension_numbers = #tpu.dot_dimension_numbers<[1], [0], [0], [1], [0, 0, 1, 1], [], []>} : vector<64x128xbf16>, vector<128x32xbf16>, vector<64x32xf32> -> vector<64x32xf32>
    %221 = vector.broadcast %9 : vector<1x32xf32> to vector<64x32xf32>
    %222 = arith.addf %220, %221 : vector<64x32xf32>
    %cst_100 = arith.constant dense<0.000000e+00> : vector<32xf32>
    %223 = vector.multi_reduction <add>, %222, %cst_100 [0] : vector<64x32xf32> to vector<32xf32>
    %224 = vector.shape_cast %223 : vector<32xf32> to vector<1x32xf32>
    %cst_101 = arith.constant 1.562500e-02 : f32
    %225 = vector.broadcast %cst_101 : f32 to vector<1x32xf32>
    %226 = arith.mulf %224, %225 : vector<1x32xf32>
    %227 = vector.broadcast %226 : vector<1x32xf32> to vector<64x32xf32>
    %228 = arith.subf %222, %227 : vector<64x32xf32>
    %229 = arith.mulf %228, %228 : vector<64x32xf32>
    %cst_102 = arith.constant dense<0.000000e+00> : vector<32xf32>
    %230 = vector.multi_reduction <add>, %229, %cst_102 [0] : vector<64x32xf32> to vector<32xf32>
    %231 = vector.shape_cast %230 : vector<32xf32> to vector<1x32xf32>
    %cst_103 = arith.constant 1.562500e-02 : f32
    %232 = vector.broadcast %cst_103 : f32 to vector<1x32xf32>
    %233 = arith.mulf %231, %232 : vector<1x32xf32>
    %cst_104 = arith.constant 9.99999974E-6 : f32
    %234 = vector.broadcast %cst_104 : f32 to vector<1x32xf32>
    %235 = arith.addf %233, %234 : vector<1x32xf32>
    %236 = math.rsqrt %235 : vector<1x32xf32>
    %237 = vector.broadcast %236 : vector<1x32xf32> to vector<64x32xf32>
    %238 = arith.mulf %228, %237 : vector<64x32xf32>
    %239 = vector.broadcast %10 : vector<1x32xf32> to vector<64x32xf32>
    %240 = arith.mulf %238, %239 : vector<64x32xf32>
    %241 = vector.broadcast %11 : vector<1x32xf32> to vector<64x32xf32>
    %242 = arith.addf %240, %241 : vector<64x32xf32>
    %cst_105 = arith.constant 0.000000e+00 : f32
    %243 = vector.broadcast %cst_105 : f32 to vector<64x32xf32>
    %244 = arith.cmpf ogt, %242, %243 : vector<64x32xf32>
    %cst_106 = arith.constant 0.00999999977 : f32
    %245 = vector.broadcast %cst_106 : f32 to vector<64x32xf32>
    %246 = arith.mulf %245, %242 : vector<64x32xf32>
    %247 = arith.select %244, %242, %246 : vector<64x32xi1>, vector<64x32xf32>
    %248 = vector.broadcast %12 : vector<1x32xf32> to vector<64x32xf32>
    %249 = arith.mulf %247, %248 : vector<64x32xf32>
    %cst_107 = arith.constant dense<0.000000e+00> : vector<64xf32>
    %250 = vector.multi_reduction <add>, %249, %cst_107 [1] : vector<64x32xf32> to vector<64xf32>
    %251 = vector.shape_cast %250 : vector<64xf32> to vector<64x1xf32>
    %252 = vector.broadcast %15 : f32 to vector<64x1xf32>
    %253 = arith.addf %251, %252 : vector<64x1xf32>
    %cst_108 = arith.constant 0.000000e+00 : f32
    %254 = vector.broadcast %cst_108 : f32 to vector<64x1xf32>
    %255 = arith.subf %254, %253 : vector<64x1xf32>
    %256 = math.exp %255 : vector<64x1xf32>
    %cst_109 = arith.constant 1.000000e+00 : f32
    %257 = vector.broadcast %cst_109 : f32 to vector<64x1xf32>
    %258 = arith.addf %257, %256 : vector<64x1xf32>
    %cst_110 = arith.constant 1.000000e+00 : f32
    %259 = vector.broadcast %cst_110 : f32 to vector<64x1xf32>
    %260 = arith.divf %259, %258 : vector<64x1xf32>
    %c1_111 = arith.constant 1 : index
    %c0_112 = arith.constant 0 : index
    %c0_113 = arith.constant 0 : index
    %261 = vector.load %arg6[%c1_111, %c0_112, %c0_113] : memref<2x64x1xf32, #tpu.memory_space<vmem>>, vector<1x64x1xf32>
    %262 = vector.shape_cast %261 : vector<1x64x1xf32> to vector<64x1xf32>
    %263 = vector.shape_cast %260 : vector<64x1xf32> to vector<1x64x1xf32>
    tpu.vector_store %arg6[%c1_111, %c0_112, %c0_113], %263 {strides = array<i32>} : memref<2x64x1xf32, #tpu.memory_space<vmem>>, vector<1x64x1xf32>,
    return
  }
  func.func @transform_0(%arg0: i32) -> i32 {
    %c0_i32 = arith.constant 0 : i32
    %c0_i32_0 = arith.constant 0 : i32
    return %c0_i32 : i32
  }
  func.func @transform_1(%arg0: i32) -> (i32, i32, i32) {
    %c0_i32 = arith.constant 0 : i32
    %c0_i32_0 = arith.constant 0 : i32
    %c0_i32_1 = arith.constant 0 : i32
    return %arg0, %c0_i32, %c0_i32_0 : i32, i32, i32
  }
  func.func @transform_2(%arg0: i32) -> (i32, i32, i32) {
    %c0_i32 = arith.constant 0 : i32
    %c0_i32_0 = arith.constant 0 : i32
    %c0_i32_1 = arith.constant 0 : i32
    return %arg0, %c0_i32, %c0_i32_0 : i32, i32, i32
  }
  func.func @transform_3(%arg0: i32) -> (i32, i32) {
    %c0_i32 = arith.constant 0 : i32
    %c0_i32_0 = arith.constant 0 : i32
    %c0_i32_1 = arith.constant 0 : i32
    return %c0_i32, %c0_i32_0 : i32, i32
  }
  func.func @transform_4(%arg0: i32) -> (i32, i32) {
    %c0_i32 = arith.constant 0 : i32
    %c0_i32_0 = arith.constant 0 : i32
    %c0_i32_1 = arith.constant 0 : i32
    return %c0_i32, %c0_i32_0 : i32, i32
  }
  func.func @transform_5(%arg0: i32) -> (i32, i32, i32) {
    %c0_i32 = arith.constant 0 : i32
    %c0_i32_0 = arith.constant 0 : i32
    %c0_i32_1 = arith.constant 0 : i32
    return %arg0, %c0_i32, %c0_i32_0 : i32, i32, i32
  }
}

</mosaic_0001>

<llo_original>
// kernel: filtration_forward.1
$region0: #{filtration_forward.1}
  #allocation0 [shape = 'u32[]', space=smem, size = 0x4, offset = 0x4, fixed_abs, tag = 'smem constant byte address 0x4 - core index']
  #allocation1 [shape = 'u32[144,128]{1,0:T(1,128)}', space=vmem, size = 0x12000, scoped, tag = 'internal scratch']
  #allocation2 [shape = 'bf16[64,128]{1,0:T(16,128)(2,1)}', space=vmem, size = 0x4000, scoped, tag = 'scratch operand']
  %s0 = inlined_call_operand.vmem [shape: f32[4], index: 0, kind: input, shape index: {}]
  %s1 = inlined_call_operand.vmem [shape: bf16[4,64,64], index: 1, kind: input, shape index: {}]
  %s2 = inlined_call_operand.vmem [shape: s8[4,64,64], index: 2, kind: input, shape index: {}]
  %s3 = inlined_call_operand.vmem [shape: bf16[224,32], index: 3, kind: input, shape index: {}]
  %s4 = inlined_call_operand.vmem [shape: f32[16,32], index: 4, kind: input, shape index: {}]
  %s5 = inlined_call_operand.vmem [shape: f32[4,64,1], index: 5, kind: output, shape index: {}]
  %s6 = sld [smem:[#allocation0]]
  $region57: #{filtration_forward.1} parent=0
    _
  %s8 = ssub.s32 1, %s6
  %s9 = scalar_select 0, %s8, %s6
  $region1: #{filtration_forward.1} parent=0
    #allocation3 [shape = 'u8[512]{0}', space=smem, size = 0x200, scoped, tag = 'input window, operand 0, single buffered']
    #allocation4 [shape = 's32[2]{0}', space=sflag, size = 0x8, scoped, tag = 'scoped memory for filtration_forward.1']
    %10 = vsyncpa [#allocation4], 0
    loop: start=0, step=1, limit=4
    $region2: #{filtration_forward.1} parent=1 // loop_pre_header
      _
    $region3: #{filtration_forward.1} parent=1 // loop_header
      %s12 = sphi 0, %s16
      %p13 = scmp.ge.s32.totalorder %s12, 4
      %s20 = sphi 0, %s20
      %s22 = sphi 0, %s20
      %s23 = sphi 0, %s22
      %s37 = sphi 0, %s23
      %s43 = sphi 0, %s45
      %s46 = sphi 0, %s43
      %s47 = sphi 0, %s46
      %s63 = sphi 0, %s47
      %s69 = sphi 0, %s71
      %s72 = sphi 0, %s69
      %s73 = sphi 0, %s72
      %s89 = sphi 0, %s73
      %s93 = sphi 0, %s93
      %s95 = sphi 0, %s93
      %s96 = sphi 0, %s95
      %s110 = sphi 0, %s96
      %s114 = sphi 0, %s114
      %s116 = sphi 0, %s114
      %s117 = sphi 0, %s116
      %s131 = sphi 0, %s117
      %s137 = sphi 0, %s139
      %s140 = sphi 0, %s137
      %s141 = sphi 0, %s140
      %s157 = sphi 0, %s141
    $region4: #{filtration_forward.1} parent=1 // loop_header_branch
      %15 = sbr.rel (%p13) target = $region8
    $region5: #{filtration_forward.1} parent=1 // loop_body
      %s17 = ssub.s32 %s12, 1
      %s18 = ssub.s32 %s12, 2
      %s19 = sadd.s32 %s12, 1
      %s21 = sadd.s32 %s20, 1
      %p24 = scmp.eq.s32.totalorder %s12, 1
      %p25 = scmp.ne.s32.totalorder %s20, %s22
      %p26 = scmp.eq.s32.totalorder %s12, 0
      %p27 = por %p25, %p26
      %p28 = scmp.ne.s32.totalorder %s20, %s22
      %p29 = scmp.eq.s32.totalorder %s17, 1
      %p30 = por %p28, %p29
      %p31 = scmp.ne.s32.totalorder %s22, %s23
      %p32 = scmp.eq.s32.totalorder %s17, 0
      %p33 = por %p31, %p32
      %p34 = scmp.ne.s32.totalorder %s22, %s23
      %p35 = scmp.eq.s32.totalorder %s18, 1
      %p36 = por %p34, %p35
      %p38 = scmp.ne.s32.totalorder %s23, %s37
      %p39 = scmp.eq.s32.totalorder %s18, 0
      %p40 = por %p38, %p39
      %s41 = ssub.s32 %s12, %s19
      %p42 = scmp.eq.s32.totalorder %s41, 0
      %s44 = sadd.s32 %s43, 1
      %s45 = scalar_select %p42, %s43, %s44
      %p48 = pneg %p42
      %p49 = scmp.eq.s32.totalorder %s12, 1
      %p50 = por %p48, %p49
      %p51 = scmp.ne.s32.totalorder %s43, %s46
      %p52 = scmp.eq.s32.totalorder %s12, 0
      %p53 = por %p51, %p52
      %p54 = scmp.ne.s32.totalorder %s43, %s46
      %p55 = scmp.eq.s32.totalorder %s17, 1
      %p56 = por %p54, %p55
      %p57 = scmp.ne.s32.totalorder %s46, %s47
      %p58 = scmp.eq.s32.totalorder %s17, 0
      %p59 = por %p57, %p58
      %p60 = scmp.ne.s32.totalorder %s46, %s47
      %p61 = scmp.eq.s32.totalorder %s18, 1
      %p62 = por %p60, %p61
      %p64 = scmp.ne.s32.totalorder %s47, %s63
      %p65 = scmp.eq.s32.totalorder %s18, 0
      %p66 = por %p64, %p65
      %s67 = ssub.s32 %s12, %s19
      %p68 = scmp.eq.s32.totalorder %s67, 0
      %s70 = sadd.s32 %s69, 1
      %s71 = scalar_select %p68, %s69, %s70
      %p74 = pneg %p68
      %p75 = scmp.eq.s32.totalorder %s12, 1
      %p76 = por %p74, %p75
      %p77 = scmp.ne.s32.totalorder %s69, %s72
      %p78 = scmp.eq.s32.totalorder %s12, 0
      %p79 = por %p77, %p78
      %p80 = scmp.ne.s32.totalorder %s69, %s72
      %p81 = scmp.eq.s32.totalorder %s17, 1
      %p82 = por %p80, %p81
      %p83 = scmp.ne.s32.totalorder %s72, %s73
      %p84 = scmp.eq.s32.totalorder %s17, 0
      %p85 = por %p83, %p84
      %p86 = scmp.ne.s32.totalorder %s72, %s73
      %p87 = scmp.eq.s32.totalorder %s18, 1
      %p88 = por %p86, %p87
      %p90 = scmp.ne.s32.totalorder %s73, %s89
      %p91 = scmp.eq.s32.totalorder %s18, 0
      %p92 = por %p90, %p91
      %s94 = sadd.s32 %s93, 1
      %p97 = scmp.eq.s32.totalorder %s12, 1
      %p98 = scmp.ne.s32.totalorder %s93, %s95
      %p99 = scmp.eq.s32.totalorder %s12, 0
      %p100 = por %p98, %p99
      %p101 = scmp.ne.s32.totalorder %s93, %s95
      %p102 = scmp.eq.s32.totalorder %s17, 1
      %p103 = por %p101, %p102
      %p104 = scmp.ne.s32.totalorder %s95, %s96
      %p105 = scmp.eq.s32.totalorder %s17, 0
      %p106 = por %p104, %p105
      %p107 = scmp.ne.s32.totalorder %s95, %s96
      %p108 = scmp.eq.s32.totalorder %s18, 1
      %p109 = por %p107, %p108
      %p111 = scmp.ne.s32.totalorder %s96, %s110
      %p112 = scmp.eq.s32.totalorder %s18, 0
      %p113 = por %p111, %p112
      %s115 = sadd.s32 %s114, 1
      %p118 = scmp.eq.s32.totalorder %s12, 1
      %p119 = scmp.ne.s32.totalorder %s114, %s116
      %p120 = scmp.eq.s32.totalorder %s12, 0
      %p121 = por %p119, %p120
      %p122 = scmp.ne.s32.totalorder %s114, %s116
      %p123 = scmp.eq.s32.totalorder %s17, 1
      %p124 = por %p122, %p123
      %p125 = scmp.ne.s32.totalorder %s116, %s117
      %p126 = scmp.eq.s32.totalorder %s17, 0
      %p127 = por %p125, %p126
      %p128 = scmp.ne.s32.totalorder %s116, %s117
      %p129 = scmp.eq.s32.totalorder %s18, 1
      %p130 = por %p128, %p129
      %p132 = scmp.ne.s32.totalorder %s117, %s131
      %p133 = scmp.eq.s32.totalorder %s18, 0
      %p134 = por %p132, %p133
      %s135 = ssub.s32 %s12, %s19
      %p136 = scmp.eq.s32.totalorder %s135, 0
      %s138 = sadd.s32 %s137, 1
      %s139 = scalar_select %p136, %s137, %s138
      %p142 = pneg %p136
      %p143 = scmp.eq.s32.totalorder %s12, 1
      %p144 = por %p142, %p143
      %p145 = scmp.ne.s32.totalorder %s137, %s140
      %p146 = scmp.eq.s32.totalorder %s12, 0
      %p147 = por %p145, %p146
      %p148 = scmp.ne.s32.totalorder %s137, %s140
      %p149 = scmp.eq.s32.totalorder %s17, 1
      %p150 = por %p148, %p149
      %p151 = scmp.ne.s32.totalorder %s140, %s141
      %p152 = scmp.eq.s32.totalorder %s17, 0
      %p153 = por %p151, %p152
      %p154 = scmp.ne.s32.totalorder %s140, %s141
      %p155 = scmp.eq.s32.totalorder %s18, 1
      %p156 = por %p154, %p155
      %p158 = scmp.ne.s32.totalorder %s141, %s157
      %p159 = scmp.eq.s32.totalorder %s18, 0
      %p160 = por %p158, %p159
      %p161 = scmp.le.s32.totalorder 1, %s12
      %p162 = scmp.lt.s32.totalorder %s12, 3
      %p163 = pnand %p161, %p162
      %p164 = pneg %p163
      // Predicated region
      $region9: #{filtration_forward.1} parent=5 // pred_check
        _
      $region10: #{filtration_forward.1} parent=5 // pred_check_branch
        %166 = sbr.rel (%p163) target = $region12
      $region11: #{filtration_forward.1} parent=5 // pred_region
        %s167 = ssub.s32 %s12, 1
        // Predicated region
        $region13: #{filtration_forward.1} parent=11 // pred_check
          %p168 = pneg %p33
        $region14: #{filtration_forward.1} parent=11 // pred_check_branch
          %170 = sbr.rel (%p168) target = $region16
        $region15: #{filtration_forward.1} parent=11 // pred_region
          %s172 = ssub.s32 16, 16
          %173 = vsyncadd [#allocation4], %s172
          %s175 = sshll.u32 %s0, 4
          %s176 = int_to_ptr.vmem [resolvable:$true] %s175
          %178 = dma.vmem_to_smem %s176, 16, [#allocation3], [#allocation4]
        $region16: #{filtration_forward.1} parent=11 // pred_fallthru
          _
        // Predicated region
        $region17: #{filtration_forward.1} parent=11 // pred_check
          %p179 = pneg %p106
        $region18: #{filtration_forward.1} parent=11 // pred_check_branch
          %181 = sbr.rel (%p179) target = $region20
        $region19: #{filtration_forward.1} parent=11 // pred_region
          _
        $region20: #{filtration_forward.1} parent=11 // pred_fallthru
          _
        // Predicated region
        $region21: #{filtration_forward.1} parent=11 // pred_check
          %p182 = pneg %p127
        $region22: #{filtration_forward.1} parent=11 // pred_check_branch
          %184 = sbr.rel (%p182) target = $region24
        $region23: #{filtration_forward.1} parent=11 // pred_region
          _
        $region24: #{filtration_forward.1} parent=11 // pred_fallthru
          _
      $region12: #{filtration_forward.1} parent=5 // pred_fallthru
        _
      %p185 = scmp.lt.s32.totalorder %s12, 2
      // Predicated region
      $region25: #{filtration_forward.1} parent=5 // pred_check
        %p186 = pneg %p185
      $region26: #{filtration_forward.1} parent=5 // pred_check_branch
        %188 = sbr.rel (%p186) target = $region28
      $region27: #{filtration_forward.1} parent=5 // pred_region
        // Predicated region
        $region29: #{filtration_forward.1} parent=27 // pred_check
          %p189 = pneg %p53
        $region30: #{filtration_forward.1} parent=27 // pred_check_branch
          %191 = sbr.rel (%p189) target = $region32
        $region31: #{filtration_forward.1} parent=27 // pred_region
          %s192 = smul.u32 2, %s12
          %p193 = scmp.lt.s32.totalorder %s192, 3
          %s194 = scalar_select %p193, %s192, 3
          %s195 = smul.addr %s194, 8
          %s196 = smul.addr %s195, 4
          %s197 = scalar_lea.vmem %s1, %s196
          %s198 = smul.u32 2, %s12
        $region32: #{filtration_forward.1} parent=27 // pred_fallthru
          _
        // Predicated region
        $region33: #{filtration_forward.1} parent=27 // pred_check
          %p199 = pneg %p79
        $region34: #{filtration_forward.1} parent=27 // pred_check_branch
          %201 = sbr.rel (%p199) target = $region36
        $region35: #{filtration_forward.1} parent=27 // pred_region
          %s202 = smul.u32 2, %s12
          %p203 = scmp.lt.s32.totalorder %s202, 3
          %s204 = scalar_select %p203, %s202, 3
          %s205 = smul.addr %s204, 2
          %s206 = smul.addr %s205, 8
          %s207 = scalar_lea.vmem %s2, %s206
          %s208 = smul.u32 2, %s12
        $region36: #{filtration_forward.1} parent=27 // pred_fallthru
          _
      $region28: #{filtration_forward.1} parent=5 // pred_fallthru
        _
      %p209 = scmp.le.s32.totalorder 1, %s12
      %p210 = scmp.lt.s32.totalorder %s12, 3
      %p211 = pnand %p209, %p210
      %p212 = pneg %p211
      // Predicated region
      $region37: #{filtration_forward.1} parent=5 // pred_check
        _
      $region38: #{filtration_forward.1} parent=5 // pred_check_branch
        %214 = sbr.rel (%p211) target = $region40
      $region39: #{filtration_forward.1} parent=5 // pred_region
        %s215 = ssub.s32 %s12, 1
        // Predicated region
        $region41: #{filtration_forward.1} parent=39 // pred_check
          %p216 = pneg %p33
        $region42: #{filtration_forward.1} parent=39 // pred_check_branch
          %218 = sbr.rel (%p216) target = $region44
        $region43: #{filtration_forward.1} parent=39 // pred_region
          %219 = dma.done [#allocation4], 16
        $region44: #{filtration_forward.1} parent=39 // pred_fallthru
          _
        %220 = sfence
        %p221 = pneg %p33
        %p222 = pneg %p30
        %s223 = smul.u32 2, %s17
        %p224 = scmp.lt.s32.totalorder %s223, 3
        %s225 = scalar_select %p224, %s223, 3
        %s226 = smul.addr %s225, 8
        %s227 = smul.addr %s226, 4
        %s228 = scalar_lea.vmem %s1, %s227
        %p229 = pneg %p59
        %p230 = pneg %p56
        %s231 = smul.u32 2, %s17
        %p232 = scmp.lt.s32.totalorder %s231, 3
        %s233 = scalar_select %p232, %s231, 3
        %s234 = smul.addr %s233, 2
        %s235 = smul.addr %s234, 8
        %s236 = scalar_lea.vmem %s2, %s235
        %p237 = pneg %p85
        %p238 = pneg %p82
        %p239 = pneg %p106
        %p240 = pneg %p103
        %p241 = pneg %p127
        %p242 = pneg %p124
        %p243 = pneg %p153
        %p244 = pneg %p150
        %s245 = smul.u32 2, %s17
        %p246 = scmp.lt.s32.totalorder %s245, 3
        %s247 = scalar_select %p246, %s245, 3
        %s248 = smul.addr %s247, 8
        %s249 = smul.addr %s248, 8
        %s250 = scalar_lea.vmem %s5, %s249
        %s251 = smul.u32 2, %s17
        %p252 = scmp.lt.s32.totalorder %s251, 3
        %s253 = scalar_select %p252, %s251, 3
        %s254 = smul.addr %s253, 8
        %s255 = smul.addr %s254, 4
        %s256 = scalar_lea.vmem %s1, %s255
        %s257 = smul.u32 2, %s17
        %s258 = smul.u32 2, %s17
        %p259 = scmp.lt.s32.totalorder %s258, 3
        %s260 = scalar_select %p259, %s258, 3
        %s261 = smul.addr %s260, 2
        %s262 = smul.addr %s261, 8
        %s263 = scalar_lea.vmem %s2, %s262
        %s264 = smul.u32 2, %s17
        %s265 = smul.u32 2, %s17
        %p266 = scmp.lt.s32.totalorder %s265, 3
        %s267 = scalar_select %p266, %s265, 3
        %s268 = smul.addr %s267, 8
        %s269 = smul.addr %s268, 8
        %s270 = scalar_lea.vmem %s5, %s269
        %s271 = smul.u32 2, %s17
        %v273 = vld [vmem:[%s3] sm:$0xf]
        %v274 = vld [vmem:[%s3 + $0x4] sm:$0xf]
        %v275 = vld [vmem:[%s3 + $0x8] sm:$0xf]
        %v276 = vld [vmem:[%s3 + $0xc] sm:$0xf]
        %v277 = vld [vmem:[%s3 + $0x10] sm:$0xf]
        %v278 = vld [vmem:[%s3 + $0x14] sm:$0xf]
        %v279 = vld [vmem:[%s3 + $0x18] sm:$0xf]
        %v280 = vld [vmem:[%s3 + $0x1c] sm:$0xf]
        %v281 = vld [vmem:[%s3 + $0x20] sm:$0xf]
        %v282 = vld [vmem:[%s3 + $0x24] sm:$0xf]
        %v283 = vld [vmem:[%s3 + $0x28] sm:$0xf]
        %v284 = vld [vmem:[%s3 + $0x2c] sm:$0xf]
        %v285 = vld [vmem:[%s3 + $0x30] sm:$0xf]
        %v286 = vld [vmem:[%s3 + $0x34] sm:$0xf]
        %v287 = vld [vmem:[%s3 + $0x38] sm:$0xf]
        %v288 = vld [vmem:[%s3 + $0x3c] sm:$0xf]
        %v289 = vld [vmem:[%s3 + $0x40] sm:$0xf]
        %v290 = vld [vmem:[%s3 + $0x44] sm:$0xf]
        %v291 = vld [vmem:[%s3 + $0x48] sm:$0xf]
        %v292 = vld [vmem:[%s3 + $0x4c] sm:$0xf]
        %v293 = vld [vmem:[%s3 + $0x50] sm:$0xf]
        %v294 = vld [vmem:[%s3 + $0x54] sm:$0xf]
        %v295 = vld [vmem:[%s3 + $0x58] sm:$0xf]
        %v296 = vld [vmem:[%s3 + $0x5c] sm:$0xf]
        %v297 = vld [vmem:[%s3 + $0x60] sm:$0xf]
        %v298 = vld [vmem:[%s3 + $0x64] sm:$0xf]
        %v299 = vld [vmem:[%s3 + $0x68] sm:$0xf]
        %v300 = vld [vmem:[%s3 + $0x6c] sm:$0xf]
        %v301 = vld [vmem:[%s4] sm:$0x1]
        %v302 = vld [vmem:[%s4 + $0x1] sm:$0x1]
        %v303 = vld [vmem:[%s4 + $0x2] sm:$0x1]
        %v304 = vld [vmem:[%s4 + $0x3] sm:$0x1]
        %v305 = vld [vmem:[%s4 + $0x4] sm:$0x1]
        %v306 = vld [vmem:[%s4 + $0x5] sm:$0x1]
        %v307 = vld [vmem:[%s4 + $0x6] sm:$0x1]
        %v308 = vld [vmem:[%s4 + $0x7] sm:$0x1]
        %v309 = vld [vmem:[%s4 + $0x8] sm:$0x1]
        %v310 = vld [vmem:[%s4 + $0x9] sm:$0x1]
        %s311 = sld [smem:[#allocation3]]
        %s312 = sld [smem:[#allocation3 + $0x1]]
        %s313 = sld [smem:[#allocation3 + $0x2]]
        %v314 = vld [vmem:[%s256] sm:$0xf]
        %v315 = vld [vmem:[%s256 + $0x4] sm:$0xf]
        %v316 = vld [vmem:[%s256 + $0x8] sm:$0xf]
        %v317 = vld [vmem:[%s256 + $0xc] sm:$0xf]
        %v318 = vld [vmem:[%s256 + $0x10] sm:$0xf]
        %v319 = vld [vmem:[%s256 + $0x14] sm:$0xf]
        %v320 = vld [vmem:[%s256 + $0x18] sm:$0xf]
        %v321 = vld [vmem:[%s256 + $0x1c] sm:$0xf]
        %v322 = vld [vmem:[%s263] sm:$0xff]
        %v323 = vld [vmem:[%s263 + $0x8] sm:$0xff]
        %v324 = vunpack.c.l.s8.bf16 %v322
        %v325 = vunpack.c.h.s8.bf16 %v322
        %v326 = vunpack.c.l.s8.bf16 %v323
        %v327 = vunpack.c.h.s8.bf16 %v323
        %v336 = vunpack.c.l.b16 %v314
        %v337 = vunpack.c.l.b16 %v315
        %v338 = vunpack.c.l.b16 %v316
        %v339 = vunpack.c.l.b16 %v317
        %v340 = vunpack.c.l.b16 %v318
        %v341 = vunpack.c.l.b16 %v319
        %v342 = vunpack.c.l.b16 %v320
        %v343 = vunpack.c.l.b16 %v321
        %v344 = vpack.c.b16 %v337, %v336
        %v345 = vpack.c.b16 %v339, %v338
        %v346 = vpack.c.b16 %v341, %v340
        %v347 = vpack.c.b16 %v343, %v342
        %vm352 = vcmask 523264
        %353 = vst.msk [vmem:[#allocation2] sm:$0xff] %vm352, %v344
        %354 = vst.msk [vmem:[#allocation2 + $0x8] sm:$0xff] %vm352, %v345
        %355 = vst.msk [vmem:[#allocation2 + $0x10] sm:$0xff] %vm352, %v346
        %356 = vst.msk [vmem:[#allocation2 + $0x18] sm:$0xff] %vm352, %v347
        %v365 = vunpack.c.l.b16 %v273
        %v366 = vunpack.c.l.b16 %v274
        %v367 = vunpack.c.l.b16 %v275
        %v368 = vunpack.c.l.b16 %v276
        %v369 = vunpack.c.l.b16 %v277
        %v370 = vunpack.c.l.b16 %v278
        %v371 = vunpack.c.l.b16 %v279
        %v372 = vunpack.c.l.b16 %v280
        %v373 = vpack.c.b16 %v366, %v365
        %v374 = vpack.c.b16 %v368, %v367
        %v375 = vpack.c.b16 %v370, %v369
        %v376 = vpack.c.b16 %v372, %v371
        %v382 = vsel %vm352, %v344, 0
        %v385 = vsel %vm352, %v345, 0
        %v388 = vsel %vm352, %v346, 0
        %v391 = vsel %vm352, %v347, 0
        %393 = vmatprep.subr.bf16.mxu0 0
        %394 = vmatpush1.bf16.msra.mxu0 %v373
        %395 = vmatprep.subr.bf16.mxu0 0
        %396 = vmatpush1.bf16.msra.mxu0 %v374
        %397 = vmatprep.subr.bf16.mxu0 0
        %398 = vmatpush1.bf16.msra.mxu0 %v375
        %399 = vmatprep.subr.bf16.mxu0 0
        %400 = vmatpush1.bf16.msra.mxu0 %v376
        %401 = vmatprep.subr.bf16.mxu0 0
        %402 = vmatpush1.bf16.msra.mxu0 0
        %403 = vmatprep.subr.bf16.mxu0 0
        %404 = vmatpush1.bf16.msra.mxu0 0
        %405 = vmatprep.subr.bf16.mxu0 0
        %406 = vmatpush1.bf16.msra.mxu0 0
        %407 = vmatprep.subr.bf16.mxu0 0
        %408 = vmatpush1.bf16.msra.mxu0 0
        %409 = vmatprep.subr.bf16.mxu0 0
        %410 = vmatpush1.bf16.msra.mxu0 0
        %411 = vmatprep.subr.bf16.mxu0 0
        %412 = vmatpush1.bf16.msra.mxu0 0
        %413 = vmatprep.subr.bf16.mxu0 0
        %414 = vmatpush1.bf16.msra.mxu0 0
        %415 = vmatprep.subr.bf16.mxu0 0
        %416 = vmatpush1.bf16.msra.mxu0 0
        %417 = vmatprep.subr.bf16.mxu0 0
        %418 = vmatpush1.bf16.msra.mxu0 0
        %419 = vmatprep.subr.bf16.mxu0 0
        %420 = vmatpush1.bf16.msra.mxu0 0
        %421 = vmatprep.subr.bf16.mxu0 0
        %422 = vmatpush1.bf16.msra.mxu0 0
        %423 = vmatprep.subr.bf16.mxu0 0
        %424 = vmatpush1.bf16.msra.mxu0 0
        %425 = vmatprep.mubr.bf16.mxu0 0
        %426 = vmatmul.mubr.bf16.gmra.mrb[0].mxu0 %v382
        %v427 = vpop.f32.mrb[0].mxu0
        %v428 = vadd.f32 0.0, %v427
        %v429 = vpop.f32.mrb[0].mxu0
        %v430 = vpop.f32.mrb[0].mxu0
        %v431 = vadd.f32 0.0, %v430
        %v432 = vpop.f32.mrb[0].mxu0
        %433 = vmatprep.mubr.bf16.mxu0 0
        %434 = vmatmul.mubr.bf16.gmra.mrb[0].mxu0 %v385
        %v435 = vpop.f32.mrb[0].mxu0
        %v436 = vadd.f32 0.0, %v435
        %v437 = vpop.f32.mrb[0].mxu0
        %v438 = vpop.f32.mrb[0].mxu0
        %v439 = vadd.f32 0.0, %v438
        %v440 = vpop.f32.mrb[0].mxu0
        %441 = vmatprep.mubr.bf16.mxu0 0
        %442 = vmatmul.mubr.bf16.gmra.mrb[0].mxu0 %v388
        %v443 = vpop.f32.mrb[0].mxu0
        %v444 = vadd.f32 0.0, %v443
        %v445 = vpop.f32.mrb[0].mxu0
        %v446 = vpop.f32.mrb[0].mxu0
        %v447 = vadd.f32 0.0, %v446
        %v448 = vpop.f32.mrb[0].mxu0
        %449 = vmatprep.mubr.bf16.mxu0 0
        %450 = vmatmul.mubr.bf16.gmra.mrb[0].mxu0 %v391
        %v451 = vpop.f32.mrb[0].mxu0
        %v452 = vadd.f32 0.0, %v451
        %v453 = vpop.f32.mrb[0].mxu0
        %v454 = vpop.f32.mrb[0].mxu0
        %v455 = vadd.f32 0.0, %v454
        %v456 = vpop.f32.mrb[0].mxu0
        %457 = vdwg.mxu0
        %v458 = vpack.c.bf16 %v431, %v428
        %v459 = vpack.c.bf16 %v439, %v436
        %v460 = vpack.c.bf16 %v447, %v444
        %v461 = vpack.c.bf16 %v455, %v452
        %s462 = sadd.f32 %s311, 1.0
        %v463 = vstv %s462
        %v464 = vmul.f32 %v463, %v428
        %v465 = vmul.f32 %v463, %v431
        %v466 = vmul.f32 %v463, %v436
        %v467 = vmul.f32 %v463, %v439
        %v468 = vmul.f32 %v463, %v444
        %v469 = vmul.f32 %v463, %v447
        %v470 = vmul.f32 %v463, %v452
        %v471 = vmul.f32 %v463, %v455
        %v473 = vsel %vm352, %v324, 0
        %v476 = vsel %vm352, %v325, 0
        %v479 = vsel %vm352, %v326, 0
        %v482 = vsel %vm352, %v327, 0
        %484 = vmatprep.subr.bf16.mxu0 0
        %485 = vmatpush1.bf16.msra.mxu0 %v458
        %486 = vmatprep.subr.bf16.mxu0 0
        %487 = vmatpush1.bf16.msra.mxu0 %v459
        %488 = vmatprep.subr.bf16.mxu0 0
        %489 = vmatpush1.bf16.msra.mxu0 %v460
        %490 = vmatprep.subr.bf16.mxu0 0
        %491 = vmatpush1.bf16.msra.mxu0 %v461
        %492 = vmatprep.subr.bf16.mxu0 0
        %493 = vmatpush1.bf16.msra.mxu0 0
        %494 = vmatprep.subr.bf16.mxu0 0
        %495 = vmatpush1.bf16.msra.mxu0 0
        %496 = vmatprep.subr.bf16.mxu0 0
        %497 = vmatpush1.bf16.msra.mxu0 0
        %498 = vmatprep.subr.bf16.mxu0 0
        %499 = vmatpush1.bf16.msra.mxu0 0
        %500 = vmatprep.subr.bf16.mxu0 0
        %501 = vmatpush1.bf16.msra.mxu0 0
        %502 = vmatprep.subr.bf16.mxu0 0
        %503 = vmatpush1.bf16.msra.mxu0 0
        %504 = vmatprep.subr.bf16.mxu0 0
        %505 = vmatpush1.bf16.msra.mxu0 0
        %506 = vmatprep.subr.bf16.mxu0 0
        %507 = vmatpush1.bf16.msra.mxu0 0
        %508 = vmatprep.subr.bf16.mxu0 0
        %509 = vmatpush1.bf16.msra.mxu0 0
        %510 = vmatprep.subr.bf16.mxu0 0
        %511 = vmatpush1.bf16.msra.mxu0 0
        %512 = vmatprep.subr.bf16.mxu0 0
        %513 = vmatpush1.bf16.msra.mxu0 0
        %514 = vmatprep.subr.bf16.mxu0 0
        %515 = vmatpush1.bf16.msra.mxu0 0
        %516 = vmatprep.mubr.bf16.mxu0 0
        %517 = vmatmul.mubr.bf16.gmra.mrb[0].mxu0 %v473
        %v518 = vpop.f32.mrb[0].mxu0
        %v519 = vadd.f32 %v464, %v518
        %v520 = vpop.f32.mrb[0].mxu0
        %v521 = vpop.f32.mrb[0].mxu0
        %v522 = vadd.f32 %v465, %v521
        %v523 = vpop.f32.mrb[0].mxu0
        %524 = vmatprep.mubr.bf16.mxu0 0
        %525 = vmatmul.mubr.bf16.gmra.mrb[0].mxu0 %v476
        %v526 = vpop.f32.mrb[0].mxu0
        %v527 = vadd.f32 %v466, %v526
        %v528 = vpop.f32.mrb[0].mxu0
        %v529 = vpop.f32.mrb[0].mxu0
        %v530 = vadd.f32 %v467, %v529
        %v531 = vpop.f32.mrb[0].mxu0
        %532 = vmatprep.mubr.bf16.mxu0 0
        %533 = vmatmul.mubr.bf16.gmra.mrb[0].mxu0 %v479
        %v534 = vpop.f32.mrb[0].mxu0
        %v535 = vadd.f32 %v468, %v534
        %v536 = vpop.f32.mrb[0].mxu0
        %v537 = vpop.f32.mrb[0].mxu0
        %v538 = vadd.f32 %v469, %v537
        %v539 = vpop.f32.mrb[0].mxu0
        %540 = vmatprep.mubr.bf16.mxu0 0
        %541 = vmatmul.mubr.bf16.gmra.mrb[0].mxu0 %v482
        %v542 = vpop.f32.mrb[0].mxu0
        %v543 = vadd.f32 %v470, %v542
        %v544 = vpop.f32.mrb[0].mxu0
        %v545 = vpop.f32.mrb[0].mxu0
        %v546 = vadd.f32 %v471, %v545
        %v547 = vpop.f32.mrb[0].mxu0
        %548 = vdwg.mxu0
        %v549 = vlaneseq
        %v550 = vshrl.u32 %v549, 7
        %v551 = vsub.s32 0, %v550
        %v552 = vrot.slane %v301, %v551
        %v553 = vadd.f32 %v519, %v552
        %v554 = vadd.f32 %v522, %v552
        %v555 = vadd.f32 %v527, %v552
        %v556 = vadd.f32 %v530, %v552
        %v557 = vadd.f32 %v535, %v552
        %v558 = vadd.f32 %v538, %v552
        %v559 = vadd.f32 %v543, %v552
        %v560 = vadd.f32 %v546, %v552
        %vm561 = vcmask 261120
        %v562 = vsel %vm561, %v553, 0.0
        %v563 = vsel %vm561, %v554, 0.0
        %v564 = vadd.f32 %v562, %v563
        %v565 = vsel %vm561, %v555, 0.0
        %v566 = vadd.f32 %v564, %v565
        %v567 = vsel %vm561, %v556, 0.0
        %v568 = vadd.f32 %v566, %v567
        %v569 = vsel %vm561, %v557, 0.0
        %v570 = vadd.f32 %v568, %v569
        %v571 = vsel %vm561, %v558, 0.0
        %v572 = vadd.f32 %v570, %v571
        %v573 = vsel %vm561, %v559, 0.0
        %v574 = vadd.f32 %v572, %v573
        %v575 = vsel %vm561, %v560, 0.0
        %v576 = vadd.f32 %v574, %v575
        %v577 = vrot.slane %v576, 4
        %v578 = vadd.f32 %v576, %v577
        %v579 = vrot.slane %v578, 2
        %v580 = vadd.f32 %v578, %v579
        %v581 = vrot.slane %v580, 1
        %v582 = vadd.f32 %v580, %v581
        %v583 = vmul.f32 %v582, 0.015625
        %v584 = vsub.f32 %v553, %v583
        %v585 = vsub.f32 %v554, %v583
        %v586 = vsub.f32 %v555, %v583
        %v587 = vsub.f32 %v556, %v583
        %v588 = vsub.f32 %v557, %v583
        %v589 = vsub.f32 %v558, %v583
        %v590 = vsub.f32 %v559, %v583
        %v591 = vsub.f32 %v560, %v583
        %v592 = vmul.f32 %v584, %v584
        %v593 = vmul.f32 %v585, %v585
        %v594 = vmul.f32 %v586, %v586
        %v595 = vmul.f32 %v587, %v587
        %v596 = vmul.f32 %v588, %v588
        %v597 = vmul.f32 %v589, %v589
        %v598 = vmul.f32 %v590, %v590
        %v599 = vmul.f32 %v591, %v591
        %v600 = vsel %vm561, %v592, 0.0
        %v601 = vsel %vm561, %v593, 0.0
        %v602 = vadd.f32 %v600, %v601
        %v603 = vsel %vm561, %v594, 0.0
        %v604 = vadd.f32 %v602, %v603
        %v605 = vsel %vm561, %v595, 0.0
        %v606 = vadd.f32 %v604, %v605
        %v607 = vsel %vm561, %v596, 0.0
        %v608 = vadd.f32 %v606, %v607
        %v609 = vsel %vm561, %v597, 0.0
        %v610 = vadd.f32 %v608, %v609
        %v611 = vsel %vm561, %v598, 0.0
        %v612 = vadd.f32 %v610, %v611
        %v613 = vsel %vm561, %v599, 0.0
        %v614 = vadd.f32 %v612, %v613
        %v615 = vrot.slane %v614, 4
        %v616 = vadd.f32 %v614, %v615
        %v617 = vrot.slane %v616, 2
        %v618 = vadd.f32 %v616, %v617
        %v619 = vrot.slane %v618, 1
        %v620 = vadd.f32 %v618, %v619
        %v621 = vmul.f32 %v620, 0.015625
        %v622 = vadd.f32 %v621, 1e-05
        %v623 = vrsqrt.pop %v622
        %v624 = vmul.f32 %v584, %v623
        %v625 = vmul.f32 %v585, %v623
        %v626 = vmul.f32 %v586, %v623
        %v627 = vmul.f32 %v587, %v623
        %v628 = vmul.f32 %v588, %v623
        %v629 = vmul.f32 %v589, %v623
        %v630 = vmul.f32 %v590, %v623
        %v631 = vmul.f32 %v591, %v623
        %v632 = vlaneseq
        %v633 = vshrl.u32 %v632, 7
        %v634 = vsub.s32 0, %v633
        %v635 = vrot.slane %v302, %v634
        %v636 = vmul.f32 %v624, %v635
        %v637 = vmul.f32 %v625, %v635
        %v638 = vmul.f32 %v626, %v635
        %v639 = vmul.f32 %v627, %v635
        %v640 = vmul.f32 %v628, %v635
        %v641 = vmul.f32 %v629, %v635
        %v642 = vmul.f32 %v630, %v635
        %v643 = vmul.f32 %v631, %v635
        %v644 = vlaneseq
        %v645 = vshrl.u32 %v644, 7
        %v646 = vsub.s32 0, %v645
        %v647 = vrot.slane %v303, %v646
        %v648 = vadd.f32 %v636, %v647
        %v649 = vadd.f32 %v637, %v647
        %v650 = vadd.f32 %v638, %v647
        %v651 = vadd.f32 %v639, %v647
        %v652 = vadd.f32 %v640, %v647
        %v653 = vadd.f32 %v641, %v647
        %v654 = vadd.f32 %v642, %v647
        %v655 = vadd.f32 %v643, %v647
        %vm656 = vcmp.gt.f32.partialorder %v648, 0.0
        %vm657 = vcmp.gt.f32.partialorder %v649, 0.0
        %vm658 = vcmp.gt.f32.partialorder %v650, 0.0
        %vm659 = vcmp.gt.f32.partialorder %v651, 0.0
        %vm660 = vcmp.gt.f32.partialorder %v652, 0.0
        %vm661 = vcmp.gt.f32.partialorder %v653, 0.0
        %vm662 = vcmp.gt.f32.partialorder %v654, 0.0
        %vm663 = vcmp.gt.f32.partialorder %v655, 0.0
        %v664 = vmul.f32 %v648, 0.01
        %v665 = vmul.f32 %v649, 0.01
        %v666 = vmul.f32 %v650, 0.01
        %v667 = vmul.f32 %v651, 0.01
        %v668 = vmul.f32 %v652, 0.01
        %v669 = vmul.f32 %v653, 0.01
        %v670 = vmul.f32 %v654, 0.01
        %v671 = vmul.f32 %v655, 0.01
        %v672 = vsel %vm656, %v648, %v664
        %v673 = vsel %vm657, %v649, %v665
        %v674 = vsel %vm658, %v650, %v666
        %v675 = vsel %vm659, %v651, %v667
        %v676 = vsel %vm660, %v652, %v668
        %v677 = vsel %vm661, %v653, %v669
        %v678 = vsel %vm662, %v654, %v670
        %v679 = vsel %vm663, %v655, %v671
        %v680 = vpack.c.bf16 %v673, %v672
        %v681 = vpack.c.bf16 %v675, %v674
        %v682 = vpack.c.bf16 %v677, %v676
        %v683 = vpack.c.bf16 %v679, %v678
        %688 = vrot.lane.b32.xlu0 %v680, 64
        %v689 = vpop.permute.xlu0 %688
        %690 = vrot.lane.b32.xlu0 %v681, 64
        %v691 = vpop.permute.xlu0 %690
        %692 = vrot.lane.b32.xlu0 %v682, 64
        %v693 = vpop.permute.xlu0 %692
        %694 = vrot.lane.b32.xlu0 %v683, 64
        %v695 = vpop.permute.xlu0 %694
        %vm700 = vcmask 785920
        %701 = vst.msk [vmem:[#allocation2] sm:$0xff] %vm700, %v689
        %702 = vst.msk [vmem:[#allocation2 + $0x8] sm:$0xff] %vm700, %v691
        %703 = vst.msk [vmem:[#allocation2 + $0x10] sm:$0xff] %vm700, %v693
        %704 = vst.msk [vmem:[#allocation2 + $0x18] sm:$0xff] %vm700, %v695
        %v709 = vunpack.c.l.b16 %v281
        %v710 = vunpack.c.l.b16 %v282
        %v711 = vunpack.c.l.b16 %v283
        %v712 = vunpack.c.l.b16 %v284
        %v713 = vpack.c.b16 %v710, %v709
        %v714 = vpack.c.b16 %v712, %v711
        %v718 = vsel %vm561, %v680, 0
        %v721 = vsel %vm561, %v681, 0
        %v724 = vsel %vm561, %v682, 0
        %v727 = vsel %vm561, %v683, 0
        %729 = vmatprep.subr.bf16.mxu0 0
        %730 = vmatpush1.bf16.msra.mxu0 %v713
        %731 = vmatprep.subr.bf16.mxu0 0
        %732 = vmatpush1.bf16.msra.mxu0 %v714
        %733 = vmatprep.subr.bf16.mxu0 0
        %734 = vmatpush1.bf16.msra.mxu0 0
        %735 = vmatprep.subr.bf16.mxu0 0
        %736 = vmatpush1.bf16.msra.mxu0 0
        %737 = vmatprep.subr.bf16.mxu0 0
        %738 = vmatpush1.bf16.msra.mxu0 0
        %739 = vmatprep.subr.bf16.mxu0 0
        %740 = vmatpush1.bf16.msra.mxu0 0
        %741 = vmatprep.subr.bf16.mxu0 0
        %742 = vmatpush1.bf16.msra.mxu0 0
        %743 = vmatprep.subr.bf16.mxu0 0
        %744 = vmatpush1.bf16.msra.mxu0 0
        %745 = vmatprep.subr.bf16.mxu0 0
        %746 = vmatpush1.bf16.msra.mxu0 0
        %747 = vmatprep.subr.bf16.mxu0 0
        %748 = vmatpush1.bf16.msra.mxu0 0
        %749 = vmatprep.subr.bf16.mxu0 0
        %750 = vmatpush1.bf16.msra.mxu0 0
        %751 = vmatprep.subr.bf16.mxu0 0
        %752 = vmatpush1.bf16.msra.mxu0 0
        %753 = vmatprep.subr.bf16.mxu0 0
        %754 = vmatpush1.bf16.msra.mxu0 0
        %755 = vmatprep.subr.bf16.mxu0 0
        %756 = vmatpush1.bf16.msra.mxu0 0
        %757 = vmatprep.subr.bf16.mxu0 0
        %758 = vmatpush1.bf16.msra.mxu0 0
        %759 = vmatprep.subr.bf16.mxu0 0
        %760 = vmatpush1.bf16.msra.mxu0 0
        %761 = vmatprep.mubr.bf16.mxu0 0
        %762 = vmatmul.mubr.bf16.gmra.mrb[0].mxu0 %v718
        %v763 = vpop.f32.mrb[0].mxu0
        %v764 = vadd.f32 0.0, %v763
        %v765 = vpop.f32.mrb[0].mxu0
        %v766 = vpop.f32.mrb[0].mxu0
        %v767 = vadd.f32 0.0, %v766
        %v768 = vpop.f32.mrb[0].mxu0
        %769 = vmatprep.mubr.bf16.mxu0 0
        %770 = vmatmul.mubr.bf16.gmra.mrb[0].mxu0 %v721
        %v771 = vpop.f32.mrb[0].mxu0
        %v772 = vadd.f32 0.0, %v771
        %v773 = vpop.f32.mrb[0].mxu0
        %v774 = vpop.f32.mrb[0].mxu0
        %v775 = vadd.f32 0.0, %v774
        %v776 = vpop.f32.mrb[0].mxu0
        %777 = vmatprep.mubr.bf16.mxu0 0
        %778 = vmatmul.mubr.bf16.gmra.mrb[0].mxu0 %v724
        %v779 = vpop.f32.mrb[0].mxu0
        %v780 = vadd.f32 0.0, %v779
        %v781 = vpop.f32.mrb[0].mxu0
        %v782 = vpop.f32.mrb[0].mxu0
        %v783 = vadd.f32 0.0, %v782
        %v784 = vpop.f32.mrb[0].mxu0
        %785 = vmatprep.mubr.bf16.mxu0 0
        %786 = vmatmul.mubr.bf16.gmra.mrb[0].mxu0 %v727
        %v787 = vpop.f32.mrb[0].mxu0
        %v788 = vadd.f32 0.0, %v787
        %v789 = vpop.f32.mrb[0].mxu0
        %v790 = vpop.f32.mrb[0].mxu0
        %v791 = vadd.f32 0.0, %v790
        %v792 = vpop.f32.mrb[0].mxu0
        %793 = vdwg.mxu0
        %v794 = vpack.c.bf16 %v767, %v764
        %v795 = vpack.c.bf16 %v775, %v772
        %v796 = vpack.c.bf16 %v783, %v780
        %v797 = vpack.c.bf16 %v791, %v788
        %s798 = sadd.f32 %s312, 1.0
        %v799 = vstv %s798
        %v800 = vmul.f32 %v799, %v764
        %v801 = vmul.f32 %v799, %v767
        %v802 = vmul.f32 %v799, %v772
        %v803 = vmul.f32 %v799, %v775
        %v804 = vmul.f32 %v799, %v780
        %v805 = vmul.f32 %v799, %v783
        %v806 = vmul.f32 %v799, %v788
        %v807 = vmul.f32 %v799, %v791
        %808 = vmatprep.subr.bf16.mxu0 0
        %809 = vmatpush1.bf16.msra.mxu0 %v794
        %810 = vmatprep.subr.bf16.mxu0 0
        %811 = vmatpush1.bf16.msra.mxu0 %v795
        %812 = vmatprep.subr.bf16.mxu0 0
        %813 = vmatpush1.bf16.msra.mxu0 %v796
        %814 = vmatprep.subr.bf16.mxu0 0
        %815 = vmatpush1.bf16.msra.mxu0 %v797
        %816 = vmatprep.subr.bf16.mxu0 0
        %817 = vmatpush1.bf16.msra.mxu0 0
        %818 = vmatprep.subr.bf16.mxu0 0
        %819 = vmatpush1.bf16.msra.mxu0 0
        %820 = vmatprep.subr.bf16.mxu0 0
        %821 = vmatpush1.bf16.msra.mxu0 0
        %822 = vmatprep.subr.bf16.mxu0 0
        %823 = vmatpush1.bf16.msra.mxu0 0
        %824 = vmatprep.subr.bf16.mxu0 0
        %825 = vmatpush1.bf16.msra.mxu0 0
        %826 = vmatprep.subr.bf16.mxu0 0
        %827 = vmatpush1.bf16.msra.mxu0 0
        %828 = vmatprep.subr.bf16.mxu0 0
        %829 = vmatpush1.bf16.msra.mxu0 0
        %830 = vmatprep.subr.bf16.mxu0 0
        %831 = vmatpush1.bf16.msra.mxu0 0
        %832 = vmatprep.subr.bf16.mxu0 0
        %833 = vmatpush1.bf16.msra.mxu0 0
        %834 = vmatprep.subr.bf16.mxu0 0
        %835 = vmatpush1.bf16.msra.mxu0 0
        %836 = vmatprep.subr.bf16.mxu0 0
        %837 = vmatpush1.bf16.msra.mxu0 0
        %838 = vmatprep.subr.bf16.mxu0 0
        %839 = vmatpush1.bf16.msra.mxu0 0
        %840 = vmatprep.mubr.bf16.mxu0 0
        %841 = vmatmul.mubr.bf16.gmra.mrb[0].mxu0 %v473
        %v842 = vpop.f32.mrb[0].mxu0
        %v843 = vadd.f32 %v800, %v842
        %v844 = vpop.f32.mrb[0].mxu0
        %v845 = vpop.f32.mrb[0].mxu0
        %v846 = vadd.f32 %v801, %v845
        %v847 = vpop.f32.mrb[0].mxu0
        %848 = vmatprep.mubr.bf16.mxu0 0
        %849 = vmatmul.mubr.bf16.gmra.mrb[0].mxu0 %v476
        %v850 = vpop.f32.mrb[0].mxu0
        %v851 = vadd.f32 %v802, %v850
        %v852 = vpop.f32.mrb[0].mxu0
        %v853 = vpop.f32.mrb[0].mxu0
        %v854 = vadd.f32 %v803, %v853
        %v855 = vpop.f32.mrb[0].mxu0
        %856 = vmatprep.mubr.bf16.mxu0 0
        %857 = vmatmul.mubr.bf16.gmra.mrb[0].mxu0 %v479
        %v858 = vpop.f32.mrb[0].mxu0
        %v859 = vadd.f32 %v804, %v858
        %v860 = vpop.f32.mrb[0].mxu0
        %v861 = vpop.f32.mrb[0].mxu0
        %v862 = vadd.f32 %v805, %v861
        %v863 = vpop.f32.mrb[0].mxu0
        %864 = vmatprep.mubr.bf16.mxu0 0
        %865 = vmatmul.mubr.bf16.gmra.mrb[0].mxu0 %v482
        %v866 = vpop.f32.mrb[0].mxu0
        %v867 = vadd.f32 %v806, %v866
        %v868 = vpop.f32.mrb[0].mxu0
        %v869 = vpop.f32.mrb[0].mxu0
        %v870 = vadd.f32 %v807, %v869
        %v871 = vpop.f32.mrb[0].mxu0
        %872 = vdwg.mxu0
        %v873 = vlaneseq
        %v874 = vshrl.u32 %v873, 7
        %v875 = vsub.s32 0, %v874
        %v876 = vrot.slane %v304, %v875
        %v877 = vadd.f32 %v843, %v876
        %v878 = vadd.f32 %v846, %v876
        %v879 = vadd.f32 %v851, %v876
        %v880 = vadd.f32 %v854, %v876
        %v881 = vadd.f32 %v859, %v876
        %v882 = vadd.f32 %v862, %v876
        %v883 = vadd.f32 %v867, %v876
        %v884 = vadd.f32 %v870, %v876
        %v885 = vsel %vm561, %v877, 0.0
        %v886 = vsel %vm561, %v878, 0.0
        %v887 = vadd.f32 %v885, %v886
        %v888 = vsel %vm561, %v879, 0.0
        %v889 = vadd.f32 %v887, %v888
        %v890 = vsel %vm561, %v880, 0.0
        %v891 = vadd.f32 %v889, %v890
        %v892 = vsel %vm561, %v881, 0.0
        %v893 = vadd.f32 %v891, %v892
        %v894 = vsel %vm561, %v882, 0.0
        %v895 = vadd.f32 %v893, %v894
        %v896 = vsel %vm561, %v883, 0.0
        %v897 = vadd.f32 %v895, %v896
        %v898 = vsel %vm561, %v884, 0.0
        %v899 = vadd.f32 %v897, %v898
        %v900 = vrot.slane %v899, 4
        %v901 = vadd.f32 %v899, %v900
        %v902 = vrot.slane %v901, 2
        %v903 = vadd.f32 %v901, %v902
        %v904 = vrot.slane %v903, 1
        %v905 = vadd.f32 %v903, %v904
        %v906 = vmul.f32 %v905, 0.015625
        %v907 = vsub.f32 %v877, %v906
        %v908 = vsub.f32 %v878, %v906
        %v909 = vsub.f32 %v879, %v906
        %v910 = vsub.f32 %v880, %v906
        %v911 = vsub.f32 %v881, %v906
        %v912 = vsub.f32 %v882, %v906
        %v913 = vsub.f32 %v883, %v906
        %v914 = vsub.f32 %v884, %v906
        %v915 = vmul.f32 %v907, %v907
        %v916 = vmul.f32 %v908, %v908
        %v917 = vmul.f32 %v909, %v909
        %v918 = vmul.f32 %v910, %v910
        %v919 = vmul.f32 %v911, %v911
        %v920 = vmul.f32 %v912, %v912
        %v921 = vmul.f32 %v913, %v913
        %v922 = vmul.f32 %v914, %v914
        %v923 = vsel %vm561, %v915, 0.0
        %v924 = vsel %vm561, %v916, 0.0
        %v925 = vadd.f32 %v923, %v924
        %v926 = vsel %vm561, %v917, 0.0
        %v927 = vadd.f32 %v925, %v926
        %v928 = vsel %vm561, %v918, 0.0
        %v929 = vadd.f32 %v927, %v928
        %v930 = vsel %vm561, %v919, 0.0
        %v931 = vadd.f32 %v929, %v930
        %v932 = vsel %vm561, %v920, 0.0
        %v933 = vadd.f32 %v931, %v932
        %v934 = vsel %vm561, %v921, 0.0
        %v935 = vadd.f32 %v933, %v934
        %v936 = vsel %vm561, %v922, 0.0
        %v937 = vadd.f32 %v935, %v936
        %v938 = vrot.slane %v937, 4
        %v939 = vadd.f32 %v937, %v938
        %v940 = vrot.slane %v939, 2
        %v941 = vadd.f32 %v939, %v940
        %v942 = vrot.slane %v941, 1
        %v943 = vadd.f32 %v941, %v942
        %v944 = vmul.f32 %v943, 0.015625
        %v945 = vadd.f32 %v944, 1e-05
        %v946 = vrsqrt.pop %v945
        %v947 = vmul.f32 %v907, %v946
        %v948 = vmul.f32 %v908, %v946
        %v949 = vmul.f32 %v909, %v946
        %v950 = vmul.f32 %v910, %v946
        %v951 = vmul.f32 %v911, %v946
        %v952 = vmul.f32 %v912, %v946
        %v953 = vmul.f32 %v913, %v946
        %v954 = vmul.f32 %v914, %v946
        %v955 = vlaneseq
        %v956 = vshrl.u32 %v955, 7
        %v957 = vsub.s32 0, %v956
        %v958 = vrot.slane %v305, %v957
        %v959 = vmul.f32 %v947, %v958
        %v960 = vmul.f32 %v948, %v958
        %v961 = vmul.f32 %v949, %v958
        %v962 = vmul.f32 %v950, %v958
        %v963 = vmul.f32 %v951, %v958
        %v964 = vmul.f32 %v952, %v958
        %v965 = vmul.f32 %v953, %v958
        %v966 = vmul.f32 %v954, %v958
        %v967 = vlaneseq
        %v968 = vshrl.u32 %v967, 7
        %v969 = vsub.s32 0, %v968
        %v970 = vrot.slane %v306, %v969
        %v971 = vadd.f32 %v959, %v970
        %v972 = vadd.f32 %v960, %v970
        %v973 = vadd.f32 %v961, %v970
        %v974 = vadd.f32 %v962, %v970
        %v975 = vadd.f32 %v963, %v970
        %v976 = vadd.f32 %v964, %v970
        %v977 = vadd.f32 %v965, %v970
        %v978 = vadd.f32 %v966, %v970
        %vm979 = vcmp.gt.f32.partialorder %v971, 0.0
        %vm980 = vcmp.gt.f32.partialorder %v972, 0.0
        %vm981 = vcmp.gt.f32.partialorder %v973, 0.0
        %vm982 = vcmp.gt.f32.partialorder %v974, 0.0
        %vm983 = vcmp.gt.f32.partialorder %v975, 0.0
        %vm984 = vcmp.gt.f32.partialorder %v976, 0.0
        %vm985 = vcmp.gt.f32.partialorder %v977, 0.0
        %vm986 = vcmp.gt.f32.partialorder %v978, 0.0
        %v987 = vmul.f32 %v971, 0.01
        %v988 = vmul.f32 %v972, 0.01
        %v989 = vmul.f32 %v973, 0.01
        %v990 = vmul.f32 %v974, 0.01
        %v991 = vmul.f32 %v975, 0.01
        %v992 = vmul.f32 %v976, 0.01
        %v993 = vmul.f32 %v977, 0.01
        %v994 = vmul.f32 %v978, 0.01
        %v995 = vsel %vm979, %v971, %v987
        %v996 = vsel %vm980, %v972, %v988
        %v997 = vsel %vm981, %v973, %v989
        %v998 = vsel %vm982, %v974, %v990
        %v999 = vsel %vm983, %v975, %v991
        %v1000 = vsel %vm984, %v976, %v992
        %v1001 = vsel %vm985, %v977, %v993
        %v1002 = vsel %vm986, %v978, %v994
        %v1003 = vpack.c.bf16 %v996, %v995
        %v1004 = vpack.c.bf16 %v998, %v997
        %v1005 = vpack.c.bf16 %v1000, %v999
        %v1006 = vpack.c.bf16 %v1002, %v1001
        %1011 = vrot.lane.b32.xlu0 %v1003, 96
        %v1012 = vpop.permute.xlu0 %1011
        %1013 = vrot.lane.b32.xlu0 %v1004, 96
        %v1014 = vpop.permute.xlu0 %1013
        %1015 = vrot.lane.b32.xlu0 %v1005, 96
        %v1016 = vpop.permute.xlu0 %1015
        %1017 = vrot.lane.b32.xlu0 %v1006, 96
        %v1018 = vpop.permute.xlu0 %1017
        %vm1023 = vcmask 1048320
        %1024 = vst.msk [vmem:[#allocation2] sm:$0xff] %vm1023, %v1012
        %1025 = vst.msk [vmem:[#allocation2 + $0x8] sm:$0xff] %vm1023, %v1014
        %1026 = vst.msk [vmem:[#allocation2 + $0x10] sm:$0xff] %vm1023, %v1016
        %1027 = vst.msk [vmem:[#allocation2 + $0x18] sm:$0xff] %vm1023, %v1018
        %v1028 = vld [vmem:[#allocation2] sm:$0xff]
        %v1029 = vld [vmem:[#allocation2 + $0x8] sm:$0xff]
        %v1030 = vld [vmem:[#allocation2 + $0x10] sm:$0xff]
        %v1031 = vld [vmem:[#allocation2 + $0x18] sm:$0xff]
        %v1032 = vlaneseq
        %v1033 = vshrl.u32 %v1032, 7
        %v1034 = vsub.s32 0, %v1033
        %v1035 = vrot.slane %v307, %v1034
        %v1052 = vunpack.c.l.b16 %v285
        %v1053 = vunpack.c.l.b16 %v286
        %v1054 = vunpack.c.l.b16 %v287
        %v1055 = vunpack.c.l.b16 %v288
        %v1056 = vunpack.c.l.b16 %v289
        %v1057 = vunpack.c.l.b16 %v290
        %v1058 = vunpack.c.l.b16 %v291
        %v1059 = vunpack.c.l.b16 %v292
        %v1060 = vunpack.c.l.b16 %v293
        %v1061 = vunpack.c.l.b16 %v294
        %v1062 = vunpack.c.l.b16 %v295
        %v1063 = vunpack.c.l.b16 %v296
        %v1064 = vunpack.c.l.b16 %v297
        %v1065 = vunpack.c.l.b16 %v298
        %v1066 = vunpack.c.l.b16 %v299
        %v1067 = vunpack.c.l.b16 %v300
        %v1068 = vpack.c.b16 %v1053, %v1052
        %v1069 = vpack.c.b16 %v1055, %v1054
        %v1070 = vpack.c.b16 %v1057, %v1056
        %v1071 = vpack.c.b16 %v1059, %v1058
        %v1072 = vpack.c.b16 %v1061, %v1060
        %v1073 = vpack.c.b16 %v1063, %v1062
        %v1074 = vpack.c.b16 %v1065, %v1064
        %v1075 = vpack.c.b16 %v1067, %v1066
        %1084 = vmatprep.subr.bf16.mxu0 0
        %1085 = vmatpush1.bf16.msra.mxu0 %v1068
        %1086 = vmatprep.subr.bf16.mxu0 0
        %1087 = vmatpush1.bf16.msra.mxu0 %v1069
        %1088 = vmatprep.subr.bf16.mxu0 0
        %1089 = vmatpush1.bf16.msra.mxu0 %v1070
        %1090 = vmatprep.subr.bf16.mxu0 0
        %1091 = vmatpush1.bf16.msra.mxu0 %v1071
        %1092 = vmatprep.subr.bf16.mxu0 0
        %1093 = vmatpush1.bf16.msra.mxu0 %v1072
        %1094 = vmatprep.subr.bf16.mxu0 0
        %1095 = vmatpush1.bf16.msra.mxu0 %v1073
        %1096 = vmatprep.subr.bf16.mxu0 0
        %1097 = vmatpush1.bf16.msra.mxu0 %v1074
        %1098 = vmatprep.subr.bf16.mxu0 0
        %1099 = vmatpush1.bf16.msra.mxu0 %v1075
        %1100 = vmatprep.subr.bf16.mxu0 0
        %1101 = vmatpush1.bf16.msra.mxu0 0
        %1102 = vmatprep.subr.bf16.mxu0 0
        %1103 = vmatpush1.bf16.msra.mxu0 0
        %1104 = vmatprep.subr.bf16.mxu0 0
        %1105 = vmatpush1.bf16.msra.mxu0 0
        %1106 = vmatprep.subr.bf16.mxu0 0
        %1107 = vmatpush1.bf16.msra.mxu0 0
        %1108 = vmatprep.subr.bf16.mxu0 0
        %1109 = vmatpush1.bf16.msra.mxu0 0
        %1110 = vmatprep.subr.bf16.mxu0 0
        %1111 = vmatpush1.bf16.msra.mxu0 0
        %1112 = vmatprep.subr.bf16.mxu0 0
        %1113 = vmatpush1.bf16.msra.mxu0 0
        %1114 = vmatprep.subr.bf16.mxu0 0
        %1115 = vmatpush1.bf16.msra.mxu0 0
        %1116 = vmatprep.mubr.bf16.mxu0 0
        %1117 = vmatmul.mubr.bf16.gmra.mrb[0].mxu0 %v1028
        %v1118 = vpop.f32.mrb[0].mxu0
        %v1119 = vadd.f32 %v1035, %v1118
        %v1120 = vpop.f32.mrb[0].mxu0
        %v1121 = vpop.f32.mrb[0].mxu0
        %v1122 = vadd.f32 %v1035, %v1121
        %v1123 = vpop.f32.mrb[0].mxu0
        %1124 = vmatprep.mubr.bf16.mxu0 0
        %1125 = vmatmul.mubr.bf16.gmra.mrb[0].mxu0 %v1029
        %v1126 = vpop.f32.mrb[0].mxu0
        %v1127 = vadd.f32 %v1035, %v1126
        %v1128 = vpop.f32.mrb[0].mxu0
        %v1129 = vpop.f32.mrb[0].mxu0
        %v1130 = vadd.f32 %v1035, %v1129
        %v1131 = vpop.f32.mrb[0].mxu0
        %1132 = vmatprep.mubr.bf16.mxu0 0
        %1133 = vmatmul.mubr.bf16.gmra.mrb[0].mxu0 %v1030
        %v1134 = vpop.f32.mrb[0].mxu0
        %v1135 = vadd.f32 %v1035, %v1134
        %v1136 = vpop.f32.mrb[0].mxu0
        %v1137 = vpop.f32.mrb[0].mxu0
        %v1138 = vadd.f32 %v1035, %v1137
        %v1139 = vpop.f32.mrb[0].mxu0
        %1140 = vmatprep.mubr.bf16.mxu0 0
        %1141 = vmatmul.mubr.bf16.gmra.mrb[0].mxu0 %v1031
        %v1142 = vpop.f32.mrb[0].mxu0
        %v1143 = vadd.f32 %v1035, %v1142
        %v1144 = vpop.f32.mrb[0].mxu0
        %v1145 = vpop.f32.mrb[0].mxu0
        %v1146 = vadd.f32 %v1035, %v1145
        %v1147 = vpop.f32.mrb[0].mxu0
        %1148 = vdwg.mxu0
        %v1149 = vsel %vm561, %v1119, 0.0
        %v1150 = vsel %vm561, %v1122, 0.0
        %v1151 = vadd.f32 %v1149, %v1150
        %v1152 = vsel %vm561, %v1127, 0.0
        %v1153 = vadd.f32 %v1151, %v1152
        %v1154 = vsel %vm561, %v1130, 0.0
        %v1155 = vadd.f32 %v1153, %v1154
        %v1156 = vsel %vm561, %v1135, 0.0
        %v1157 = vadd.f32 %v1155, %v1156
        %v1158 = vsel %vm561, %v1138, 0.0
        %v1159 = vadd.f32 %v1157, %v1158
        %v1160 = vsel %vm561, %v1143, 0.0
        %v1161 = vadd.f32 %v1159, %v1160
        %v1162 = vsel %vm561, %v1146, 0.0
        %v1163 = vadd.f32 %v1161, %v1162
        %v1164 = vrot.slane %v1163, 4
        %v1165 = vadd.f32 %v1163, %v1164
        %v1166 = vrot.slane %v1165, 2
        %v1167 = vadd.f32 %v1165, %v1166
        %v1168 = vrot.slane %v1167, 1
        %v1169 = vadd.f32 %v1167, %v1168
        %v1170 = vmul.f32 %v1169, 0.015625
        %v1171 = vsub.f32 %v1119, %v1170
        %v1172 = vsub.f32 %v1122, %v1170
        %v1173 = vsub.f32 %v1127, %v1170
        %v1174 = vsub.f32 %v1130, %v1170
        %v1175 = vsub.f32 %v1135, %v1170
        %v1176 = vsub.f32 %v1138, %v1170
        %v1177 = vsub.f32 %v1143, %v1170
        %v1178 = vsub.f32 %v1146, %v1170
        %v1179 = vmul.f32 %v1171, %v1171
        %v1180 = vmul.f32 %v1172, %v1172
        %v1181 = vmul.f32 %v1173, %v1173
        %v1182 = vmul.f32 %v1174, %v1174
        %v1183 = vmul.f32 %v1175, %v1175
        %v1184 = vmul.f32 %v1176, %v1176
        %v1185 = vmul.f32 %v1177, %v1177
        %v1186 = vmul.f32 %v1178, %v1178
        %v1187 = vsel %vm561, %v1179, 0.0
        %v1188 = vsel %vm561, %v1180, 0.0
        %v1189 = vadd.f32 %v1187, %v1188
        %v1190 = vsel %vm561, %v1181, 0.0
        %v1191 = vadd.f32 %v1189, %v1190
        %v1192 = vsel %vm561, %v1182, 0.0
        %v1193 = vadd.f32 %v1191, %v1192
        %v1194 = vsel %vm561, %v1183, 0.0
        %v1195 = vadd.f32 %v1193, %v1194
        %v1196 = vsel %vm561, %v1184, 0.0
        %v1197 = vadd.f32 %v1195, %v1196
        %v1198 = vsel %vm561, %v1185, 0.0
        %v1199 = vadd.f32 %v1197, %v1198
        %v1200 = vsel %vm561, %v1186, 0.0
        %v1201 = vadd.f32 %v1199, %v1200
        %v1202 = vrot.slane %v1201, 4
        %v1203 = vadd.f32 %v1201, %v1202
        %v1204 = vrot.slane %v1203, 2
        %v1205 = vadd.f32 %v1203, %v1204
        %v1206 = vrot.slane %v1205, 1
        %v1207 = vadd.f32 %v1205, %v1206
        %v1208 = vmul.f32 %v1207, 0.015625
        %v1209 = vadd.f32 %v1208, 1e-05
        %v1210 = vrsqrt.pop %v1209
        %v1211 = vmul.f32 %v1171, %v1210
        %v1212 = vmul.f32 %v1172, %v1210
        %v1213 = vmul.f32 %v1173, %v1210
        %v1214 = vmul.f32 %v1174, %v1210
        %v1215 = vmul.f32 %v1175, %v1210
        %v1216 = vmul.f32 %v1176, %v1210
        %v1217 = vmul.f32 %v1177, %v1210
        %v1218 = vmul.f32 %v1178, %v1210
        %v1219 = vlaneseq
        %v1220 = vshrl.u32 %v1219, 7
        %v1221 = vsub.s32 0, %v1220
        %v1222 = vrot.slane %v308, %v1221
        %v1223 = vmul.f32 %v1211, %v1222
        %v1224 = vmul.f32 %v1212, %v1222
        %v1225 = vmul.f32 %v1213, %v1222
        %v1226 = vmul.f32 %v1214, %v1222
        %v1227 = vmul.f32 %v1215, %v1222
        %v1228 = vmul.f32 %v1216, %v1222
        %v1229 = vmul.f32 %v1217, %v1222
        %v1230 = vmul.f32 %v1218, %v1222
        %v1231 = vlaneseq
        %v1232 = vshrl.u32 %v1231, 7
        %v1233 = vsub.s32 0, %v1232
        %v1234 = vrot.slane %v309, %v1233
        %v1235 = vadd.f32 %v1223, %v1234
        %v1236 = vadd.f32 %v1224, %v1234
        %v1237 = vadd.f32 %v1225, %v1234
        %v1238 = vadd.f32 %v1226, %v1234
        %v1239 = vadd.f32 %v1227, %v1234
        %v1240 = vadd.f32 %v1228, %v1234
        %v1241 = vadd.f32 %v1229, %v1234
        %v1242 = vadd.f32 %v1230, %v1234
        %vm1243 = vcmp.gt.f32.partialorder %v1235, 0.0
        %vm1244 = vcmp.gt.f32.partialorder %v1236, 0.0
        %vm1245 = vcmp.gt.f32.partialorder %v1237, 0.0
        %vm1246 = vcmp.gt.f32.partialorder %v1238, 0.0
        %vm1247 = vcmp.gt.f32.partialorder %v1239, 0.0
        %vm1248 = vcmp.gt.f32.partialorder %v1240, 0.0
        %vm1249 = vcmp.gt.f32.partialorder %v1241, 0.0
        %vm1250 = vcmp.gt.f32.partialorder %v1242, 0.0
        %v1251 = vmul.f32 %v1235, 0.01
        %v1252 = vmul.f32 %v1236, 0.01
        %v1253 = vmul.f32 %v1237, 0.01
        %v1254 = vmul.f32 %v1238, 0.01
        %v1255 = vmul.f32 %v1239, 0.01
        %v1256 = vmul.f32 %v1240, 0.01
        %v1257 = vmul.f32 %v1241, 0.01
        %v1258 = vmul.f32 %v1242, 0.01
        %v1259 = vsel %vm1243, %v1235, %v1251
        %v1260 = vsel %vm1244, %v1236, %v1252
        %v1261 = vsel %vm1245, %v1237, %v1253
        %v1262 = vsel %vm1246, %v1238, %v1254
        %v1263 = vsel %vm1247, %v1239, %v1255
        %v1264 = vsel %vm1248, %v1240, %v1256
        %v1265 = vsel %vm1249, %v1241, %v1257
        %v1266 = vsel %vm1250, %v1242, %v1258
        %v1267 = vlaneseq
        %v1268 = vshrl.u32 %v1267, 7
        %v1269 = vsub.s32 0, %v1268
        %v1270 = vrot.slane %v310, %v1269
        %v1271 = vmul.f32 %v1259, %v1270
        %v1272 = vmul.f32 %v1260, %v1270
        %v1273 = vmul.f32 %v1261, %v1270
        %v1274 = vmul.f32 %v1262, %v1270
        %v1275 = vmul.f32 %v1263, %v1270
        %v1276 = vmul.f32 %v1264, %v1270
        %v1277 = vmul.f32 %v1265, %v1270
        %v1278 = vmul.f32 %v1266, %v1270
        %v1279 = vsel %vm561, %v1271, 0.0
        %1280 = vadd.xlane.f32.xlu0 %v1279
        %v1281 = vpop.xlane.xlu0 %1280
        %v1282 = vsel %vm561, %v1272, 0.0
        %1283 = vadd.xlane.f32.xlu0 %v1282
        %v1284 = vpop.xlane.xlu0 %1283
        %v1285 = vsel %vm561, %v1273, 0.0
        %1286 = vadd.xlane.f32.xlu0 %v1285
        %v1287 = vpop.xlane.xlu0 %1286
        %v1288 = vsel %vm561, %v1274, 0.0
        %1289 = vadd.xlane.f32.xlu0 %v1288
        %v1290 = vpop.xlane.xlu0 %1289
        %v1291 = vsel %vm561, %v1275, 0.0
        %1292 = vadd.xlane.f32.xlu0 %v1291
        %v1293 = vpop.xlane.xlu0 %1292
        %v1294 = vsel %vm561, %v1276, 0.0
        %1295 = vadd.xlane.f32.xlu0 %v1294
        %v1296 = vpop.xlane.xlu0 %1295
        %v1297 = vsel %vm561, %v1277, 0.0
        %1298 = vadd.xlane.f32.xlu0 %v1297
        %v1299 = vpop.xlane.xlu0 %1298
        %v1300 = vsel %vm561, %v1278, 0.0
        %1301 = vadd.xlane.f32.xlu0 %v1300
        %v1302 = vpop.xlane.xlu0 %1301
        %v1303 = vstv %s313
        %v1304 = vadd.f32 %v1281, %v1303
        %v1305 = vadd.f32 %v1284, %v1303
        %v1306 = vadd.f32 %v1287, %v1303
        %v1307 = vadd.f32 %v1290, %v1303
        %v1308 = vadd.f32 %v1293, %v1303
        %v1309 = vadd.f32 %v1296, %v1303
        %v1310 = vadd.f32 %v1299, %v1303
        %v1311 = vadd.f32 %v1302, %v1303
        %v1312 = vsub.f32 0.0, %v1304
        %v1313 = vsub.f32 0.0, %v1305
        %v1314 = vsub.f32 0.0, %v1306
        %v1315 = vsub.f32 0.0, %v1307
        %v1316 = vsub.f32 0.0, %v1308
        %v1317 = vsub.f32 0.0, %v1309
        %v1318 = vsub.f32 0.0, %v1310
        %v1319 = vsub.f32 0.0, %v1311
        %v1320 = vmul.f32 %v1312, 1.442695
        %v1321 = vpow.pop %v1320
        %v1322 = vmul.f32 %v1313, 1.442695
        %v1323 = vpow.pop %v1322
        %v1324 = vmul.f32 %v1314, 1.442695
        %v1325 = vpow.pop %v1324
        %v1326 = vmul.f32 %v1315, 1.442695
        %v1327 = vpow.pop %v1326
        %v1328 = vmul.f32 %v1316, 1.442695
        %v1329 = vpow.pop %v1328
        %v1330 = vmul.f32 %v1317, 1.442695
        %v1331 = vpow.pop %v1330
        %v1332 = vmul.f32 %v1318, 1.442695
        %v1333 = vpow.pop %v1332
        %v1334 = vmul.f32 %v1319, 1.442695
        %v1335 = vpow.pop %v1334
        %v1336 = vadd.f32 %v1321, 1.0
        %v1337 = vadd.f32 %v1323, 1.0
        %v1338 = vadd.f32 %v1325, 1.0
        %v1339 = vadd.f32 %v1327, 1.0
        %v1340 = vadd.f32 %v1329, 1.0
        %v1341 = vadd.f32 %v1331, 1.0
        %v1342 = vadd.f32 %v1333, 1.0
        %v1343 = vadd.f32 %v1335, 1.0
        %v1344 = vrcp.pop %v1336
        %v1345 = vmul.f32 1.0, %v1344
        %v1346 = vrcp.pop %v1337
        %v1347 = vmul.f32 1.0, %v1346
        %v1348 = vrcp.pop %v1338
        %v1349 = vmul.f32 1.0, %v1348
        %v1350 = vrcp.pop %v1339
        %v1351 = vmul.f32 1.0, %v1350
        %v1352 = vrcp.pop %v1340
        %v1353 = vmul.f32 1.0, %v1352
        %v1354 = vrcp.pop %v1341
        %v1355 = vmul.f32 1.0, %v1354
        %v1356 = vrcp.pop %v1342
        %v1357 = vmul.f32 1.0, %v1356
        %v1358 = vrcp.pop %v1343
        %v1359 = vmul.f32 1.0, %v1358
        %vm1360 = vcmask 7168
        %1361 = vst.msk [vmem:[%s270] sm:$0xff] %vm1360, %v1345
        %1362 = vst.msk [vmem:[%s270 + $0x8] sm:$0xff] %vm1360, %v1347
        %1363 = vst.msk [vmem:[%s270 + $0x10] sm:$0xff] %vm1360, %v1349
        %1364 = vst.msk [vmem:[%s270 + $0x18] sm:$0xff] %vm1360, %v1351
        %1365 = vst.msk [vmem:[%s270 + $0x20] sm:$0xff] %vm1360, %v1353
        %1366 = vst.msk [vmem:[%s270 + $0x28] sm:$0xff] %vm1360, %v1355
        %1367 = vst.msk [vmem:[%s270 + $0x30] sm:$0xff] %vm1360, %v1357
        %1368 = vst.msk [vmem:[%s270 + $0x38] sm:$0xff] %vm1360, %v1359
        %s1369 = scalar_lea.vmem %s256, 32
        %v1370 = vld [vmem:[%s1369] sm:$0xf]
        %v1371 = vld [vmem:[%s1369 + $0x4] sm:$0xf]
        %v1372 = vld [vmem:[%s1369 + $0x8] sm:$0xf]
        %v1373 = vld [vmem:[%s1369 + $0xc] sm:$0xf]
        %v1374 = vld [vmem:[%s1369 + $0x10] sm:$0xf]
        %v1375 = vld [vmem:[%s1369 + $0x14] sm:$0xf]
        %v1376 = vld [vmem:[%s1369 + $0x18] sm:$0xf]
        %v1377 = vld [vmem:[%s1369 + $0x1c] sm:$0xf]
        %s1378 = scalar_lea.vmem %s263, 16
        %v1379 = vld [vmem:[%s1378] sm:$0xff]
        %v1380 = vld [vmem:[%s1378 + $0x8] sm:$0xff]
        %v1381 = vunpack.c.l.s8.bf16 %v1379
        %v1382 = vunpack.c.h.s8.bf16 %v1379
        %v1383 = vunpack.c.l.s8.bf16 %v1380
        %v1384 = vunpack.c.h.s8.bf16 %v1380
        %v1393 = vunpack.c.l.b16 %v1370
        %v1394 = vunpack.c.l.b16 %v1371
        %v1395 = vunpack.c.l.b16 %v1372
        %v1396 = vunpack.c.l.b16 %v1373
        %v1397 = vunpack.c.l.b16 %v1374
        %v1398 = vunpack.c.l.b16 %v1375
        %v1399 = vunpack.c.l.b16 %v1376
        %v1400 = vunpack.c.l.b16 %v1377
        %v1401 = vpack.c.b16 %v1394, %v1393
        %v1402 = vpack.c.b16 %v1396, %v1395
        %v1403 = vpack.c.b16 %v1398, %v1397
        %v1404 = vpack.c.b16 %v1400, %v1399
        %1409 = vst.msk [vmem:[#allocation2] sm:$0xff] %vm352, %v1401
        %1410 = vst.msk [vmem:[#allocation2 + $0x8] sm:$0xff] %vm352, %v1402
        %1411 = vst.msk [vmem:[#allocation2 + $0x10] sm:$0xff] %vm352, %v1403
        %1412 = vst.msk [vmem:[#allocation2 + $0x18] sm:$0xff] %vm352, %v1404
        %v1414 = vsel %vm352, %v1401, 0
        %v1417 = vsel %vm352, %v1402, 0
        %v1420 = vsel %vm352, %v1403, 0
        %v1423 = vsel %vm352, %v1404, 0
        %1425 = vmatprep.subr.bf16.mxu0 0
        %1426 = vmatpush1.bf16.msra.mxu0 %v373
        %1427 = vmatprep.subr.bf16.mxu0 0
        %1428 = vmatpush1.bf16.msra.mxu0 %v374
        %1429 = vmatprep.subr.bf16.mxu0 0
        %1430 = vmatpush1.bf16.msra.mxu0 %v375
        %1431 = vmatprep.subr.bf16.mxu0 0
        %1432 = vmatpush1.bf16.msra.mxu0 %v376
        %1433 = vmatprep.subr.bf16.mxu0 0
        %1434 = vmatpush1.bf16.msra.mxu0 0
        %1435 = vmatprep.subr.bf16.mxu0 0
        %1436 = vmatpush1.bf16.msra.mxu0 0
        %1437 = vmatprep.subr.bf16.mxu0 0
        %1438 = vmatpush1.bf16.msra.mxu0 0
        %1439 = vmatprep.subr.bf16.mxu0 0
        %1440 = vmatpush1.bf16.msra.mxu0 0
        %1441 = vmatprep.subr.bf16.mxu0 0
        %1442 = vmatpush1.bf16.msra.mxu0 0
        %1443 = vmatprep.subr.bf16.mxu0 0
        %1444 = vmatpush1.bf16.msra.mxu0 0
        %1445 = vmatprep.subr.bf16.mxu0 0
        %1446 = vmatpush1.bf16.msra.mxu0 0
        %1447 = vmatprep.subr.bf16.mxu0 0
        %1448 = vmatpush1.bf16.msra.mxu0 0
        %1449 = vmatprep.subr.bf16.mxu0 0
        %1450 = vmatpush1.bf16.msra.mxu0 0
        %1451 = vmatprep.subr.bf16.mxu0 0
        %1452 = vmatpush1.bf16.msra.mxu0 0
        %1453 = vmatprep.subr.bf16.mxu0 0
        %1454 = vmatpush1.bf16.msra.mxu0 0
        %1455 = vmatprep.subr.bf16.mxu0 0
        %1456 = vmatpush1.bf16.msra.mxu0 0
        %1457 = vmatprep.mubr.bf16.mxu0 0
        %1458 = vmatmul.mubr.bf16.gmra.mrb[0].mxu0 %v1414
        %v1459 = vpop.f32.mrb[0].mxu0
        %v1460 = vadd.f32 0.0, %v1459
        %v1461 = vpop.f32.mrb[0].mxu0
        %v1462 = vpop.f32.mrb[0].mxu0
        %v1463 = vadd.f32 0.0, %v1462
        %v1464 = vpop.f32.mrb[0].mxu0
        %1465 = vmatprep.mubr.bf16.mxu0 0
        %1466 = vmatmul.mubr.bf16.gmra.mrb[0].mxu0 %v1417
        %v1467 = vpop.f32.mrb[0].mxu0
        %v1468 = vadd.f32 0.0, %v1467
        %v1469 = vpop.f32.mrb[0].mxu0
        %v1470 = vpop.f32.mrb[0].mxu0
        %v1471 = vadd.f32 0.0, %v1470
        %v1472 = vpop.f32.mrb[0].mxu0
        %1473 = vmatprep.mubr.bf16.mxu0 0
        %1474 = vmatmul.mubr.bf16.gmra.mrb[0].mxu0 %v1420
        %v1475 = vpop.f32.mrb[0].mxu0
        %v1476 = vadd.f32 0.0, %v1475
        %v1477 = vpop.f32.mrb[0].mxu0
        %v1478 = vpop.f32.mrb[0].mxu0
        %v1479 = vadd.f32 0.0, %v1478
        %v1480 = vpop.f32.mrb[0].mxu0
        %1481 = vmatprep.mubr.bf16.mxu0 0
        %1482 = vmatmul.mubr.bf16.gmra.mrb[0].mxu0 %v1423
        %v1483 = vpop.f32.mrb[0].mxu0
        %v1484 = vadd.f32 0.0, %v1483
        %v1485 = vpop.f32.mrb[0].mxu0
        %v1486 = vpop.f32.mrb[0].mxu0
        %v1487 = vadd.f32 0.0, %v1486
        %v1488 = vpop.f32.mrb[0].mxu0
        %1489 = vdwg.mxu0
        %v1490 = vpack.c.bf16 %v1463, %v1460
        %v1491 = vpack.c.bf16 %v1471, %v1468
        %v1492 = vpack.c.bf16 %v1479, %v1476
        %v1493 = vpack.c.bf16 %v1487, %v1484
        %v1494 = vmul.f32 %v463, %v1460
        %v1495 = vmul.f32 %v463, %v1463
        %v1496 = vmul.f32 %v463, %v1468
        %v1497 = vmul.f32 %v463, %v1471
        %v1498 = vmul.f32 %v463, %v1476
        %v1499 = vmul.f32 %v463, %v1479
        %v1500 = vmul.f32 %v463, %v1484
        %v1501 = vmul.f32 %v463, %v1487
        %v1503 = vsel %vm352, %v1381, 0
        %v1506 = vsel %vm352, %v1382, 0
        %v1509 = vsel %vm352, %v1383, 0
        %v1512 = vsel %vm352, %v1384, 0
        %1514 = vmatprep.subr.bf16.mxu0 0
        %1515 = vmatpush1.bf16.msra.mxu0 %v1490
        %1516 = vmatprep.subr.bf16.mxu0 0
        %1517 = vmatpush1.bf16.msra.mxu0 %v1491
        %1518 = vmatprep.subr.bf16.mxu0 0
        %1519 = vmatpush1.bf16.msra.mxu0 %v1492
        %1520 = vmatprep.subr.bf16.mxu0 0
        %1521 = vmatpush1.bf16.msra.mxu0 %v1493
        %1522 = vmatprep.subr.bf16.mxu0 0
        %1523 = vmatpush1.bf16.msra.mxu0 0
        %1524 = vmatprep.subr.bf16.mxu0 0
        %1525 = vmatpush1.bf16.msra.mxu0 0
        %1526 = vmatprep.subr.bf16.mxu0 0
        %1527 = vmatpush1.bf16.msra.mxu0 0
        %1528 = vmatprep.subr.bf16.mxu0 0
        %1529 = vmatpush1.bf16.msra.mxu0 0
        %1530 = vmatprep.subr.bf16.mxu0 0
        %1531 = vmatpush1.bf16.msra.mxu0 0
        %1532 = vmatprep.subr.bf16.mxu0 0
        %1533 = vmatpush1.bf16.msra.mxu0 0
        %1534 = vmatprep.subr.bf16.mxu0 0
        %1535 = vmatpush1.bf16.msra.mxu0 0
        %1536 = vmatprep.subr.bf16.mxu0 0
        %1537 = vmatpush1.bf16.msra.mxu0 0
        %1538 = vmatprep.subr.bf16.mxu0 0
        %1539 = vmatpush1.bf16.msra.mxu0 0
        %1540 = vmatprep.subr.bf16.mxu0 0
        %1541 = vmatpush1.bf16.msra.mxu0 0
        %1542 = vmatprep.subr.bf16.mxu0 0
        %1543 = vmatpush1.bf16.msra.mxu0 0
        %1544 = vmatprep.subr.bf16.mxu0 0
        %1545 = vmatpush1.bf16.msra.mxu0 0
        %1546 = vmatprep.mubr.bf16.mxu0 0
        %1547 = vmatmul.mubr.bf16.gmra.mrb[0].mxu0 %v1503
        %v1548 = vpop.f32.mrb[0].mxu0
        %v1549 = vadd.f32 %v1494, %v1548
        %v1550 = vpop.f32.mrb[0].mxu0
        %v1551 = vpop.f32.mrb[0].mxu0
        %v1552 = vadd.f32 %v1495, %v1551
        %v1553 = vpop.f32.mrb[0].mxu0
        %1554 = vmatprep.mubr.bf16.mxu0 0
        %1555 = vmatmul.mubr.bf16.gmra.mrb[0].mxu0 %v1506
        %v1556 = vpop.f32.mrb[0].mxu0
        %v1557 = vadd.f32 %v1496, %v1556
        %v1558 = vpop.f32.mrb[0].mxu0
        %v1559 = vpop.f32.mrb[0].mxu0
        %v1560 = vadd.f32 %v1497, %v1559
        %v1561 = vpop.f32.mrb[0].mxu0
        %1562 = vmatprep.mubr.bf16.mxu0 0
        %1563 = vmatmul.mubr.bf16.gmra.mrb[0].mxu0 %v1509
        %v1564 = vpop.f32.mrb[0].mxu0
        %v1565 = vadd.f32 %v1498, %v1564
        %v1566 = vpop.f32.mrb[0].mxu0
        %v1567 = vpop.f32.mrb[0].mxu0
        %v1568 = vadd.f32 %v1499, %v1567
        %v1569 = vpop.f32.mrb[0].mxu0
        %1570 = vmatprep.mubr.bf16.mxu0 0
        %1571 = vmatmul.mubr.bf16.gmra.mrb[0].mxu0 %v1512
        %v1572 = vpop.f32.mrb[0].mxu0
        %v1573 = vadd.f32 %v1500, %v1572
        %v1574 = vpop.f32.mrb[0].mxu0
        %v1575 = vpop.f32.mrb[0].mxu0
        %v1576 = vadd.f32 %v1501, %v1575
        %v1577 = vpop.f32.mrb[0].mxu0
        %1578 = vdwg.mxu0
        %v1579 = vadd.f32 %v1549, %v552
        %v1580 = vadd.f32 %v1552, %v552
        %v1581 = vadd.f32 %v1557, %v552
        %v1582 = vadd.f32 %v1560, %v552
        %v1583 = vadd.f32 %v1565, %v552
        %v1584 = vadd.f32 %v1568, %v552
        %v1585 = vadd.f32 %v1573, %v552
        %v1586 = vadd.f32 %v1576, %v552
        %v1587 = vsel %vm561, %v1579, 0.0
        %v1588 = vsel %vm561, %v1580, 0.0
        %v1589 = vadd.f32 %v1587, %v1588
        %v1590 = vsel %vm561, %v1581, 0.0
        %v1591 = vadd.f32 %v1589, %v1590
        %v1592 = vsel %vm561, %v1582, 0.0
        %v1593 = vadd.f32 %v1591, %v1592
        %v1594 = vsel %vm561, %v1583, 0.0
        %v1595 = vadd.f32 %v1593, %v1594
        %v1596 = vsel %vm561, %v1584, 0.0
        %v1597 = vadd.f32 %v1595, %v1596
        %v1598 = vsel %vm561, %v1585, 0.0
        %v1599 = vadd.f32 %v1597, %v1598
        %v1600 = vsel %vm561, %v1586, 0.0
        %v1601 = vadd.f32 %v1599, %v1600
        %v1602 = vrot.slane %v1601, 4
        %v1603 = vadd.f32 %v1601, %v1602
        %v1604 = vrot.slane %v1603, 2
        %v1605 = vadd.f32 %v1603, %v1604
        %v1606 = vrot.slane %v1605, 1
        %v1607 = vadd.f32 %v1605, %v1606
        %v1608 = vmul.f32 %v1607, 0.015625
        %v1609 = vsub.f32 %v1579, %v1608
        %v1610 = vsub.f32 %v1580, %v1608
        %v1611 = vsub.f32 %v1581, %v1608
        %v1612 = vsub.f32 %v1582, %v1608
        %v1613 = vsub.f32 %v1583, %v1608
        %v1614 = vsub.f32 %v1584, %v1608
        %v1615 = vsub.f32 %v1585, %v1608
        %v1616 = vsub.f32 %v1586, %v1608
        %v1617 = vmul.f32 %v1609, %v1609
        %v1618 = vmul.f32 %v1610, %v1610
        %v1619 = vmul.f32 %v1611, %v1611
        %v1620 = vmul.f32 %v1612, %v1612
        %v1621 = vmul.f32 %v1613, %v1613
        %v1622 = vmul.f32 %v1614, %v1614
        %v1623 = vmul.f32 %v1615, %v1615
        %v1624 = vmul.f32 %v1616, %v1616
        %v1625 = vsel %vm561, %v1617, 0.0
        %v1626 = vsel %vm561, %v1618, 0.0
        %v1627 = vadd.f32 %v1625, %v1626
        %v1628 = vsel %vm561, %v1619, 0.0
        %v1629 = vadd.f32 %v1627, %v1628
        %v1630 = vsel %vm561, %v1620, 0.0
        %v1631 = vadd.f32 %v1629, %v1630
        %v1632 = vsel %vm561, %v1621, 0.0
        %v1633 = vadd.f32 %v1631, %v1632
        %v1634 = vsel %vm561, %v1622, 0.0
        %v1635 = vadd.f32 %v1633, %v1634
        %v1636 = vsel %vm561, %v1623, 0.0
        %v1637 = vadd.f32 %v1635, %v1636
        %v1638 = vsel %vm561, %v1624, 0.0
        %v1639 = vadd.f32 %v1637, %v1638
        %v1640 = vrot.slane %v1639, 4
        %v1641 = vadd.f32 %v1639, %v1640
        %v1642 = vrot.slane %v1641, 2
        %v1643 = vadd.f32 %v1641, %v1642
        %v1644 = vrot.slane %v1643, 1
        %v1645 = vadd.f32 %v1643, %v1644
        %v1646 = vmul.f32 %v1645, 0.015625
        %v1647 = vadd.f32 %v1646, 1e-05
        %v1648 = vrsqrt.pop %v1647
        %v1649 = vmul.f32 %v1609, %v1648
        %v1650 = vmul.f32 %v1610, %v1648
        %v1651 = vmul.f32 %v1611, %v1648
        %v1652 = vmul.f32 %v1612, %v1648
        %v1653 = vmul.f32 %v1613, %v1648
        %v1654 = vmul.f32 %v1614, %v1648
        %v1655 = vmul.f32 %v1615, %v1648
        %v1656 = vmul.f32 %v1616, %v1648
        %v1657 = vmul.f32 %v1649, %v635
        %v1658 = vmul.f32 %v1650, %v635
        %v1659 = vmul.f32 %v1651, %v635
        %v1660 = vmul.f32 %v1652, %v635
        %v1661 = vmul.f32 %v1653, %v635
        %v1662 = vmul.f32 %v1654, %v635
        %v1663 = vmul.f32 %v1655, %v635
        %v1664 = vmul.f32 %v1656, %v635
        %v1665 = vadd.f32 %v1657, %v647
        %v1666 = vadd.f32 %v1658, %v647
        %v1667 = vadd.f32 %v1659, %v647
        %v1668 = vadd.f32 %v1660, %v647
        %v1669 = vadd.f32 %v1661, %v647
        %v1670 = vadd.f32 %v1662, %v647
        %v1671 = vadd.f32 %v1663, %v647
        %v1672 = vadd.f32 %v1664, %v647
        %vm1673 = vcmp.gt.f32.partialorder %v1665, 0.0
        %vm1674 = vcmp.gt.f32.partialorder %v1666, 0.0
        %vm1675 = vcmp.gt.f32.partialorder %v1667, 0.0
        %vm1676 = vcmp.gt.f32.partialorder %v1668, 0.0
        %vm1677 = vcmp.gt.f32.partialorder %v1669, 0.0
        %vm1678 = vcmp.gt.f32.partialorder %v1670, 0.0
        %vm1679 = vcmp.gt.f32.partialorder %v1671, 0.0
        %vm1680 = vcmp.gt.f32.partialorder %v1672, 0.0
        %v1681 = vmul.f32 %v1665, 0.01
        %v1682 = vmul.f32 %v1666, 0.01
        %v1683 = vmul.f32 %v1667, 0.01
        %v1684 = vmul.f32 %v1668, 0.01
        %v1685 = vmul.f32 %v1669, 0.01
        %v1686 = vmul.f32 %v1670, 0.01
        %v1687 = vmul.f32 %v1671, 0.01
        %v1688 = vmul.f32 %v1672, 0.01
        %v1689 = vsel %vm1673, %v1665, %v1681
        %v1690 = vsel %vm1674, %v1666, %v1682
        %v1691 = vsel %vm1675, %v1667, %v1683
        %v1692 = vsel %vm1676, %v1668, %v1684
        %v1693 = vsel %vm1677, %v1669, %v1685
        %v1694 = vsel %vm1678, %v1670, %v1686
        %v1695 = vsel %vm1679, %v1671, %v1687
        %v1696 = vsel %vm1680, %v1672, %v1688
        %v1697 = vpack.c.bf16 %v1690, %v1689
        %v1698 = vpack.c.bf16 %v1692, %v1691
        %v1699 = vpack.c.bf16 %v1694, %v1693
        %v1700 = vpack.c.bf16 %v1696, %v1695
        %1705 = vrot.lane.b32.xlu0 %v1697, 64
        %v1706 = vpop.permute.xlu0 %1705
        %1707 = vrot.lane.b32.xlu0 %v1698, 64
        %v1708 = vpop.permute.xlu0 %1707
        %1709 = vrot.lane.b32.xlu0 %v1699, 64
        %v1710 = vpop.permute.xlu0 %1709
        %1711 = vrot.lane.b32.xlu0 %v1700, 64
        %v1712 = vpop.permute.xlu0 %1711
        %1717 = vst.msk [vmem:[#allocation2] sm:$0xff] %vm700, %v1706
        %1718 = vst.msk [vmem:[#allocation2 + $0x8] sm:$0xff] %vm700, %v1708
        %1719 = vst.msk [vmem:[#allocation2 + $0x10] sm:$0xff] %vm700, %v1710
        %1720 = vst.msk [vmem:[#allocation2 + $0x18] sm:$0xff] %vm700, %v1712
        %v1722 = vsel %vm561, %v1697, 0
        %v1725 = vsel %vm561, %v1698, 0
        %v1728 = vsel %vm561, %v1699, 0
        %v1731 = vsel %vm561, %v1700, 0
        %1733 = vmatprep.subr.bf16.mxu0 0
        %1734 = vmatpush1.bf16.msra.mxu0 %v713
        %1735 = vmatprep.subr.bf16.mxu0 0
        %1736 = vmatpush1.bf16.msra.mxu0 %v714
        %1737 = vmatprep.subr.bf16.mxu0 0
        %1738 = vmatpush1.bf16.msra.mxu0 0
        %1739 = vmatprep.subr.bf16.mxu0 0
        %1740 = vmatpush1.bf16.msra.mxu0 0
        %1741 = vmatprep.subr.bf16.mxu0 0
        %1742 = vmatpush1.bf16.msra.mxu0 0
        %1743 = vmatprep.subr.bf16.mxu0 0
        %1744 = vmatpush1.bf16.msra.mxu0 0
        %1745 = vmatprep.subr.bf16.mxu0 0
        %1746 = vmatpush1.bf16.msra.mxu0 0
        %1747 = vmatprep.subr.bf16.mxu0 0
        %1748 = vmatpush1.bf16.msra.mxu0 0
        %1749 = vmatprep.subr.bf16.mxu0 0
        %1750 = vmatpush1.bf16.msra.mxu0 0
        %1751 = vmatprep.subr.bf16.mxu0 0
        %1752 = vmatpush1.bf16.msra.mxu0 0
        %1753 = vmatprep.subr.bf16.mxu0 0
        %1754 = vmatpush1.bf16.msra.mxu0 0
        %1755 = vmatprep.subr.bf16.mxu0 0
        %1756 = vmatpush1.bf16.msra.mxu0 0
        %1757 = vmatprep.subr.bf16.mxu0 0
        %1758 = vmatpush1.bf16.msra.mxu0 0
        %1759 = vmatprep.subr.bf16.mxu0 0
        %1760 = vmatpush1.bf16.msra.mxu0 0
        %1761 = vmatprep.subr.bf16.mxu0 0
        %1762 = vmatpush1.bf16.msra.mxu0 0
        %1763 = vmatprep.subr.bf16.mxu0 0
        %1764 = vmatpush1.bf16.msra.mxu0 0
        %1765 = vmatprep.mubr.bf16.mxu0 0
        %1766 = vmatmul.mubr.bf16.gmra.mrb[0].mxu0 %v1722
        %v1767 = vpop.f32.mrb[0].mxu0
        %v1768 = vadd.f32 0.0, %v1767
        %v1769 = vpop.f32.mrb[0].mxu0
        %v1770 = vpop.f32.mrb[0].mxu0
        %v1771 = vadd.f32 0.0, %v1770
        %v1772 = vpop.f32.mrb[0].mxu0
        %1773 = vmatprep.mubr.bf16.mxu0 0
        %1774 = vmatmul.mubr.bf16.gmra.mrb[0].mxu0 %v1725
        %v1775 = vpop.f32.mrb[0].mxu0
        %v1776 = vadd.f32 0.0, %v1775
        %v1777 = vpop.f32.mrb[0].mxu0
        %v1778 = vpop.f32.mrb[0].mxu0
        %v1779 = vadd.f32 0.0, %v1778
        %v1780 = vpop.f32.mrb[0].mxu0
        %1781 = vmatprep.mubr.bf16.mxu0 0
        %1782 = vmatmul.mubr.bf16.gmra.mrb[0].mxu0 %v1728
        %v1783 = vpop.f32.mrb[0].mxu0
        %v1784 = vadd.f32 0.0, %v1783
        %v1785 = vpop.f32.mrb[0].mxu0
        %v1786 = vpop.f32.mrb[0].mxu0
        %v1787 = vadd.f32 0.0, %v1786
        %v1788 = vpop.f32.mrb[0].mxu0
        %1789 = vmatprep.mubr.bf16.mxu0 0
        %1790 = vmatmul.mubr.bf16.gmra.mrb[0].mxu0 %v1731
        %v1791 = vpop.f32.mrb[0].mxu0
        %v1792 = vadd.f32 0.0, %v1791
        %v1793 = vpop.f32.mrb[0].mxu0
        %v1794 = vpop.f32.mrb[0].mxu0
        %v1795 = vadd.f32 0.0, %v1794
        %v1796 = vpop.f32.mrb[0].mxu0
        %1797 = vdwg.mxu0
        %v1798 = vpack.c.bf16 %v1771, %v1768
        %v1799 = vpack.c.bf16 %v1779, %v1776
        %v1800 = vpack.c.bf16 %v1787, %v1784
        %v1801 = vpack.c.bf16 %v1795, %v1792
        %v1802 = vmul.f32 %v799, %v1768
        %v1803 = vmul.f32 %v799, %v1771
        %v1804 = vmul.f32 %v799, %v1776
        %v1805 = vmul.f32 %v799, %v1779
        %v1806 = vmul.f32 %v799, %v1784
        %v1807 = vmul.f32 %v799, %v1787
        %v1808 = vmul.f32 %v799, %v1792
        %v1809 = vmul.f32 %v799, %v1795
        %1810 = vmatprep.subr.bf16.mxu0 0
        %1811 = vmatpush1.bf16.msra.mxu0 %v1798
        %1812 = vmatprep.subr.bf16.mxu0 0
        %1813 = vmatpush1.bf16.msra.mxu0 %v1799
        %1814 = vmatprep.subr.bf16.mxu0 0
        %1815 = vmatpush1.bf16.msra.mxu0 %v1800
        %1816 = vmatprep.subr.bf16.mxu0 0
        %1817 = vmatpush1.bf16.msra.mxu0 %v1801
        %1818 = vmatprep.subr.bf16.mxu0 0
        %1819 = vmatpush1.bf16.msra.mxu0 0
        %1820 = vmatprep.subr.bf16.mxu0 0
        %1821 = vmatpush1.bf16.msra.mxu0 0
        %1822 = vmatprep.subr.bf16.mxu0 0
        %1823 = vmatpush1.bf16.msra.mxu0 0
        %1824 = vmatprep.subr.bf16.mxu0 0
        %1825 = vmatpush1.bf16.msra.mxu0 0
        %1826 = vmatprep.subr.bf16.mxu0 0
        %1827 = vmatpush1.bf16.msra.mxu0 0
        %1828 = vmatprep.subr.bf16.mxu0 0
        %1829 = vmatpush1.bf16.msra.mxu0 0
        %1830 = vmatprep.subr.bf16.mxu0 0
        %1831 = vmatpush1.bf16.msra.mxu0 0
        %1832 = vmatprep.subr.bf16.mxu0 0
        %1833 = vmatpush1.bf16.msra.mxu0 0
        %1834 = vmatprep.subr.bf16.mxu0 0
        %1835 = vmatpush1.bf16.msra.mxu0 0
        %1836 = vmatprep.subr.bf16.mxu0 0
        %1837 = vmatpush1.bf16.msra.mxu0 0
        %1838 = vmatprep.subr.bf16.mxu0 0
        %1839 = vmatpush1.bf16.msra.mxu0 0
        %1840 = vmatprep.subr.bf16.mxu0 0
        %1841 = vmatpush1.bf16.msra.mxu0 0
        %1842 = vmatprep.mubr.bf16.mxu0 0
        %1843 = vmatmul.mubr.bf16.gmra.mrb[0].mxu0 %v1503
        %v1844 = vpop.f32.mrb[0].mxu0
        %v1845 = vadd.f32 %v1802, %v1844
        %v1846 = vpop.f32.mrb[0].mxu0
        %v1847 = vpop.f32.mrb[0].mxu0
        %v1848 = vadd.f32 %v1803, %v1847
        %v1849 = vpop.f32.mrb[0].mxu0
        %1850 = vmatprep.mubr.bf16.mxu0 0
        %1851 = vmatmul.mubr.bf16.gmra.mrb[0].mxu0 %v1506
        %v1852 = vpop.f32.mrb[0].mxu0
        %v1853 = vadd.f32 %v1804, %v1852
        %v1854 = vpop.f32.mrb[0].mxu0
        %v1855 = vpop.f32.mrb[0].mxu0
        %v1856 = vadd.f32 %v1805, %v1855
        %v1857 = vpop.f32.mrb[0].mxu0
        %1858 = vmatprep.mubr.bf16.mxu0 0
        %1859 = vmatmul.mubr.bf16.gmra.mrb[0].mxu0 %v1509
        %v1860 = vpop.f32.mrb[0].mxu0
        %v1861 = vadd.f32 %v1806, %v1860
        %v1862 = vpop.f32.mrb[0].mxu0
        %v1863 = vpop.f32.mrb[0].mxu0
        %v1864 = vadd.f32 %v1807, %v1863
        %v1865 = vpop.f32.mrb[0].mxu0
        %1866 = vmatprep.mubr.bf16.mxu0 0
        %1867 = vmatmul.mubr.bf16.gmra.mrb[0].mxu0 %v1512
        %v1868 = vpop.f32.mrb[0].mxu0
        %v1869 = vadd.f32 %v1808, %v1868
        %v1870 = vpop.f32.mrb[0].mxu0
        %v1871 = vpop.f32.mrb[0].mxu0
        %v1872 = vadd.f32 %v1809, %v1871
        %v1873 = vpop.f32.mrb[0].mxu0
        %1874 = vdwg.mxu0
        %v1875 = vadd.f32 %v1845, %v876
        %v1876 = vadd.f32 %v1848, %v876
        %v1877 = vadd.f32 %v1853, %v876
        %v1878 = vadd.f32 %v1856, %v876
        %v1879 = vadd.f32 %v1861, %v876
        %v1880 = vadd.f32 %v1864, %v876
        %v1881 = vadd.f32 %v1869, %v876
        %v1882 = vadd.f32 %v1872, %v876
        %v1883 = vsel %vm561, %v1875, 0.0
        %v1884 = vsel %vm561, %v1876, 0.0
        %v1885 = vadd.f32 %v1883, %v1884
        %v1886 = vsel %vm561, %v1877, 0.0
        %v1887 = vadd.f32 %v1885, %v1886
        %v1888 = vsel %vm561, %v1878, 0.0
        %v1889 = vadd.f32 %v1887, %v1888
        %v1890 = vsel %vm561, %v1879, 0.0
        %v1891 = vadd.f32 %v1889, %v1890
        %v1892 = vsel %vm561, %v1880, 0.0
        %v1893 = vadd.f32 %v1891, %v1892
        %v1894 = vsel %vm561, %v1881, 0.0
        %v1895 = vadd.f32 %v1893, %v1894
        %v1896 = vsel %vm561, %v1882, 0.0
        %v1897 = vadd.f32 %v1895, %v1896
        %v1898 = vrot.slane %v1897, 4
        %v1899 = vadd.f32 %v1897, %v1898
        %v1900 = vrot.slane %v1899, 2
        %v1901 = vadd.f32 %v1899, %v1900
        %v1902 = vrot.slane %v1901, 1
        %v1903 = vadd.f32 %v1901, %v1902
        %v1904 = vmul.f32 %v1903, 0.015625
        %v1905 = vsub.f32 %v1875, %v1904
        %v1906 = vsub.f32 %v1876, %v1904
        %v1907 = vsub.f32 %v1877, %v1904
        %v1908 = vsub.f32 %v1878, %v1904
        %v1909 = vsub.f32 %v1879, %v1904
        %v1910 = vsub.f32 %v1880, %v1904
        %v1911 = vsub.f32 %v1881, %v1904
        %v1912 = vsub.f32 %v1882, %v1904
        %v1913 = vmul.f32 %v1905, %v1905
        %v1914 = vmul.f32 %v1906, %v1906
        %v1915 = vmul.f32 %v1907, %v1907
        %v1916 = vmul.f32 %v1908, %v1908
        %v1917 = vmul.f32 %v1909, %v1909
        %v1918 = vmul.f32 %v1910, %v1910
        %v1919 = vmul.f32 %v1911, %v1911
        %v1920 = vmul.f32 %v1912, %v1912
        %v1921 = vsel %vm561, %v1913, 0.0
        %v1922 = vsel %vm561, %v1914, 0.0
        %v1923 = vadd.f32 %v1921, %v1922
        %v1924 = vsel %vm561, %v1915, 0.0
        %v1925 = vadd.f32 %v1923, %v1924
        %v1926 = vsel %vm561, %v1916, 0.0
        %v1927 = vadd.f32 %v1925, %v1926
        %v1928 = vsel %vm561, %v1917, 0.0
        %v1929 = vadd.f32 %v1927, %v1928
        %v1930 = vsel %vm561, %v1918, 0.0
        %v1931 = vadd.f32 %v1929, %v1930
        %v1932 = vsel %vm561, %v1919, 0.0
        %v1933 = vadd.f32 %v1931, %v1932
        %v1934 = vsel %vm561, %v1920, 0.0
        %v1935 = vadd.f32 %v1933, %v1934
        %v1936 = vrot.slane %v1935, 4
        %v1937 = vadd.f32 %v1935, %v1936
        %v1938 = vrot.slane %v1937, 2
        %v1939 = vadd.f32 %v1937, %v1938
        %v1940 = vrot.slane %v1939, 1
        %v1941 = vadd.f32 %v1939, %v1940
        %v1942 = vmul.f32 %v1941, 0.015625
        %v1943 = vadd.f32 %v1942, 1e-05
        %v1944 = vrsqrt.pop %v1943
        %v1945 = vmul.f32 %v1905, %v1944
        %v1946 = vmul.f32 %v1906, %v1944
        %v1947 = vmul.f32 %v1907, %v1944
        %v1948 = vmul.f32 %v1908, %v1944
        %v1949 = vmul.f32 %v1909, %v1944
        %v1950 = vmul.f32 %v1910, %v1944
        %v1951 = vmul.f32 %v1911, %v1944
        %v1952 = vmul.f32 %v1912, %v1944
        %v1953 = vmul.f32 %v1945, %v958
        %v1954 = vmul.f32 %v1946, %v958
        %v1955 = vmul.f32 %v1947, %v958
        %v1956 = vmul.f32 %v1948, %v958
        %v1957 = vmul.f32 %v1949, %v958
        %v1958 = vmul.f32 %v1950, %v958
        %v1959 = vmul.f32 %v1951, %v958
        %v1960 = vmul.f32 %v1952, %v958
        %v1961 = vadd.f32 %v1953, %v970
        %v1962 = vadd.f32 %v1954, %v970
        %v1963 = vadd.f32 %v1955, %v970
        %v1964 = vadd.f32 %v1956, %v970
        %v1965 = vadd.f32 %v1957, %v970
        %v1966 = vadd.f32 %v1958, %v970
        %v1967 = vadd.f32 %v1959, %v970
        %v1968 = vadd.f32 %v1960, %v970
        %vm1969 = vcmp.gt.f32.partialorder %v1961, 0.0
        %vm1970 = vcmp.gt.f32.partialorder %v1962, 0.0
        %vm1971 = vcmp.gt.f32.partialorder %v1963, 0.0
        %vm1972 = vcmp.gt.f32.partialorder %v1964, 0.0
        %vm1973 = vcmp.gt.f32.partialorder %v1965, 0.0
        %vm1974 = vcmp.gt.f32.partialorder %v1966, 0.0
        %vm1975 = vcmp.gt.f32.partialorder %v1967, 0.0
        %vm1976 = vcmp.gt.f32.partialorder %v1968, 0.0
        %v1977 = vmul.f32 %v1961, 0.01
        %v1978 = vmul.f32 %v1962, 0.01
        %v1979 = vmul.f32 %v1963, 0.01
        %v1980 = vmul.f32 %v1964, 0.01
        %v1981 = vmul.f32 %v1965, 0.01
        %v1982 = vmul.f32 %v1966, 0.01
        %v1983 = vmul.f32 %v1967, 0.01
        %v1984 = vmul.f32 %v1968, 0.01
        %v1985 = vsel %vm1969, %v1961, %v1977
        %v1986 = vsel %vm1970, %v1962, %v1978
        %v1987 = vsel %vm1971, %v1963, %v1979
        %v1988 = vsel %vm1972, %v1964, %v1980
        %v1989 = vsel %vm1973, %v1965, %v1981
        %v1990 = vsel %vm1974, %v1966, %v1982
        %v1991 = vsel %vm1975, %v1967, %v1983
        %v1992 = vsel %vm1976, %v1968, %v1984
        %v1993 = vpack.c.bf16 %v1986, %v1985
        %v1994 = vpack.c.bf16 %v1988, %v1987
        %v1995 = vpack.c.bf16 %v1990, %v1989
        %v1996 = vpack.c.bf16 %v1992, %v1991
        %2001 = vrot.lane.b32.xlu0 %v1993, 96
        %v2002 = vpop.permute.xlu0 %2001
        %2003 = vrot.lane.b32.xlu0 %v1994, 96
        %v2004 = vpop.permute.xlu0 %2003
        %2005 = vrot.lane.b32.xlu0 %v1995, 96
        %v2006 = vpop.permute.xlu0 %2005
        %2007 = vrot.lane.b32.xlu0 %v1996, 96
        %v2008 = vpop.permute.xlu0 %2007
        %2013 = vst.msk [vmem:[#allocation2] sm:$0xff] %vm1023, %v2002
        %2014 = vst.msk [vmem:[#allocation2 + $0x8] sm:$0xff] %vm1023, %v2004
        %2015 = vst.msk [vmem:[#allocation2 + $0x10] sm:$0xff] %vm1023, %v2006
        %2016 = vst.msk [vmem:[#allocation2 + $0x18] sm:$0xff] %vm1023, %v2008
        %v2017 = vld [vmem:[#allocation2] sm:$0xff]
        %v2018 = vld [vmem:[#allocation2 + $0x8] sm:$0xff]
        %v2019 = vld [vmem:[#allocation2 + $0x10] sm:$0xff]
        %v2020 = vld [vmem:[#allocation2 + $0x18] sm:$0xff]
        %2021 = vmatprep.subr.bf16.mxu0 0
        %2022 = vmatpush1.bf16.msra.mxu0 %v1068
        %2023 = vmatprep.subr.bf16.mxu0 0
        %2024 = vmatpush1.bf16.msra.mxu0 %v1069
        %2025 = vmatprep.subr.bf16.mxu0 0
        %2026 = vmatpush1.bf16.msra.mxu0 %v1070
        %2027 = vmatprep.subr.bf16.mxu0 0
        %2028 = vmatpush1.bf16.msra.mxu0 %v1071
        %2029 = vmatprep.subr.bf16.mxu0 0
        %2030 = vmatpush1.bf16.msra.mxu0 %v1072
        %2031 = vmatprep.subr.bf16.mxu0 0
        %2032 = vmatpush1.bf16.msra.mxu0 %v1073
        %2033 = vmatprep.subr.bf16.mxu0 0
        %2034 = vmatpush1.bf16.msra.mxu0 %v1074
        %2035 = vmatprep.subr.bf16.mxu0 0
        %2036 = vmatpush1.bf16.msra.mxu0 %v1075
        %2037 = vmatprep.subr.bf16.mxu0 0
        %2038 = vmatpush1.bf16.msra.mxu0 0
        %2039 = vmatprep.subr.bf16.mxu0 0
        %2040 = vmatpush1.bf16.msra.mxu0 0
        %2041 = vmatprep.subr.bf16.mxu0 0
        %2042 = vmatpush1.bf16.msra.mxu0 0
        %2043 = vmatprep.subr.bf16.mxu0 0
        %2044 = vmatpush1.bf16.msra.mxu0 0
        %2045 = vmatprep.subr.bf16.mxu0 0
        %2046 = vmatpush1.bf16.msra.mxu0 0
        %2047 = vmatprep.subr.bf16.mxu0 0
        %2048 = vmatpush1.bf16.msra.mxu0 0
        %2049 = vmatprep.subr.bf16.mxu0 0
        %2050 = vmatpush1.bf16.msra.mxu0 0
        %2051 = vmatprep.subr.bf16.mxu0 0
        %2052 = vmatpush1.bf16.msra.mxu0 0
        %2053 = vmatprep.mubr.bf16.mxu0 0
        %2054 = vmatmul.mubr.bf16.gmra.mrb[0].mxu0 %v2017
        %v2055 = vpop.f32.mrb[0].mxu0
        %v2056 = vadd.f32 %v1035, %v2055
        %v2057 = vpop.f32.mrb[0].mxu0
        %v2058 = vpop.f32.mrb[0].mxu0
        %v2059 = vadd.f32 %v1035, %v2058
        %v2060 = vpop.f32.mrb[0].mxu0
        %2061 = vmatprep.mubr.bf16.mxu0 0
        %2062 = vmatmul.mubr.bf16.gmra.mrb[0].mxu0 %v2018
        %v2063 = vpop.f32.mrb[0].mxu0
        %v2064 = vadd.f32 %v1035, %v2063
        %v2065 = vpop.f32.mrb[0].mxu0
        %v2066 = vpop.f32.mrb[0].mxu0
        %v2067 = vadd.f32 %v1035, %v2066
        %v2068 = vpop.f32.mrb[0].mxu0
        %2069 = vmatprep.mubr.bf16.mxu0 0
        %2070 = vmatmul.mubr.bf16.gmra.mrb[0].mxu0 %v2019
        %v2071 = vpop.f32.mrb[0].mxu0
        %v2072 = vadd.f32 %v1035, %v2071
        %v2073 = vpop.f32.mrb[0].mxu0
        %v2074 = vpop.f32.mrb[0].mxu0
        %v2075 = vadd.f32 %v1035, %v2074
        %v2076 = vpop.f32.mrb[0].mxu0
        %2077 = vmatprep.mubr.bf16.mxu0 0
        %2078 = vmatmul.mubr.bf16.gmra.mrb[0].mxu0 %v2020
        %v2079 = vpop.f32.mrb[0].mxu0
        %v2080 = vadd.f32 %v1035, %v2079
        %v2081 = vpop.f32.mrb[0].mxu0
        %v2082 = vpop.f32.mrb[0].mxu0
        %v2083 = vadd.f32 %v1035, %v2082
        %v2084 = vpop.f32.mrb[0].mxu0
        %2085 = vdwg.mxu0
        %v2086 = vsel %vm561, %v2056, 0.0
        %v2087 = vsel %vm561, %v2059, 0.0
        %v2088 = vadd.f32 %v2086, %v2087
        %v2089 = vsel %vm561, %v2064, 0.0
        %v2090 = vadd.f32 %v2088, %v2089
        %v2091 = vsel %vm561, %v2067, 0.0
        %v2092 = vadd.f32 %v2090, %v2091
        %v2093 = vsel %vm561, %v2072, 0.0
        %v2094 = vadd.f32 %v2092, %v2093
        %v2095 = vsel %vm561, %v2075, 0.0
        %v2096 = vadd.f32 %v2094, %v2095
        %v2097 = vsel %vm561, %v2080, 0.0
        %v2098 = vadd.f32 %v2096, %v2097
        %v2099 = vsel %vm561, %v2083, 0.0
        %v2100 = vadd.f32 %v2098, %v2099
        %v2101 = vrot.slane %v2100, 4
        %v2102 = vadd.f32 %v2100, %v2101
        %v2103 = vrot.slane %v2102, 2
        %v2104 = vadd.f32 %v2102, %v2103
        %v2105 = vrot.slane %v2104, 1
        %v2106 = vadd.f32 %v2104, %v2105
        %v2107 = vmul.f32 %v2106, 0.015625
        %v2108 = vsub.f32 %v2056, %v2107
        %v2109 = vsub.f32 %v2059, %v2107
        %v2110 = vsub.f32 %v2064, %v2107
        %v2111 = vsub.f32 %v2067, %v2107
        %v2112 = vsub.f32 %v2072, %v2107
        %v2113 = vsub.f32 %v2075, %v2107
        %v2114 = vsub.f32 %v2080, %v2107
        %v2115 = vsub.f32 %v2083, %v2107
        %v2116 = vmul.f32 %v2108, %v2108
        %v2117 = vmul.f32 %v2109, %v2109
        %v2118 = vmul.f32 %v2110, %v2110
        %v2119 = vmul.f32 %v2111, %v2111
        %v2120 = vmul.f32 %v2112, %v2112
        %v2121 = vmul.f32 %v2113, %v2113
        %v2122 = vmul.f32 %v2114, %v2114
        %v2123 = vmul.f32 %v2115, %v2115
        %v2124 = vsel %vm561, %v2116, 0.0
        %v2125 = vsel %vm561, %v2117, 0.0
        %v2126 = vadd.f32 %v2124, %v2125
        %v2127 = vsel %vm561, %v2118, 0.0
        %v2128 = vadd.f32 %v2126, %v2127
        %v2129 = vsel %vm561, %v2119, 0.0
        %v2130 = vadd.f32 %v2128, %v2129
        %v2131 = vsel %vm561, %v2120, 0.0
        %v2132 = vadd.f32 %v2130, %v2131
        %v2133 = vsel %vm561, %v2121, 0.0
        %v2134 = vadd.f32 %v2132, %v2133
        %v2135 = vsel %vm561, %v2122, 0.0
        %v2136 = vadd.f32 %v2134, %v2135
        %v2137 = vsel %vm561, %v2123, 0.0
        %v2138 = vadd.f32 %v2136, %v2137
        %v2139 = vrot.slane %v2138, 4
        %v2140 = vadd.f32 %v2138, %v2139
        %v2141 = vrot.slane %v2140, 2
        %v2142 = vadd.f32 %v2140, %v2141
        %v2143 = vrot.slane %v2142, 1
        %v2144 = vadd.f32 %v2142, %v2143
        %v2145 = vmul.f32 %v2144, 0.015625
        %v2146 = vadd.f32 %v2145, 1e-05
        %v2147 = vrsqrt.pop %v2146
        %v2148 = vmul.f32 %v2108, %v2147
        %v2149 = vmul.f32 %v2109, %v2147
        %v2150 = vmul.f32 %v2110, %v2147
        %v2151 = vmul.f32 %v2111, %v2147
        %v2152 = vmul.f32 %v2112, %v2147
        %v2153 = vmul.f32 %v2113, %v2147
        %v2154 = vmul.f32 %v2114, %v2147
        %v2155 = vmul.f32 %v2115, %v2147
        %v2156 = vmul.f32 %v2148, %v1222
        %v2157 = vmul.f32 %v2149, %v1222
        %v2158 = vmul.f32 %v2150, %v1222
        %v2159 = vmul.f32 %v2151, %v1222
        %v2160 = vmul.f32 %v2152, %v1222
        %v2161 = vmul.f32 %v2153, %v1222
        %v2162 = vmul.f32 %v2154, %v1222
        %v2163 = vmul.f32 %v2155, %v1222
        %v2164 = vadd.f32 %v2156, %v1234
        %v2165 = vadd.f32 %v2157, %v1234
        %v2166 = vadd.f32 %v2158, %v1234
        %v2167 = vadd.f32 %v2159, %v1234
        %v2168 = vadd.f32 %v2160, %v1234
        %v2169 = vadd.f32 %v2161, %v1234
        %v2170 = vadd.f32 %v2162, %v1234
        %v2171 = vadd.f32 %v2163, %v1234
        %vm2172 = vcmp.gt.f32.partialorder %v2164, 0.0
        %vm2173 = vcmp.gt.f32.partialorder %v2165, 0.0
        %vm2174 = vcmp.gt.f32.partialorder %v2166, 0.0
        %vm2175 = vcmp.gt.f32.partialorder %v2167, 0.0
        %vm2176 = vcmp.gt.f32.partialorder %v2168, 0.0
        %vm2177 = vcmp.gt.f32.partialorder %v2169, 0.0
        %vm2178 = vcmp.gt.f32.partialorder %v2170, 0.0
        %vm2179 = vcmp.gt.f32.partialorder %v2171, 0.0
        %v2180 = vmul.f32 %v2164, 0.01
        %v2181 = vmul.f32 %v2165, 0.01
        %v2182 = vmul.f32 %v2166, 0.01
        %v2183 = vmul.f32 %v2167, 0.01
        %v2184 = vmul.f32 %v2168, 0.01
        %v2185 = vmul.f32 %v2169, 0.01
        %v2186 = vmul.f32 %v2170, 0.01
        %v2187 = vmul.f32 %v2171, 0.01
        %v2188 = vsel %vm2172, %v2164, %v2180
        %v2189 = vsel %vm2173, %v2165, %v2181
        %v2190 = vsel %vm2174, %v2166, %v2182
        %v2191 = vsel %vm2175, %v2167, %v2183
        %v2192 = vsel %vm2176, %v2168, %v2184
        %v2193 = vsel %vm2177, %v2169, %v2185
        %v2194 = vsel %vm2178, %v2170, %v2186
        %v2195 = vsel %vm2179, %v2171, %v2187
        %v2196 = vmul.f32 %v2188, %v1270
        %v2197 = vmul.f32 %v2189, %v1270
        %v2198 = vmul.f32 %v2190, %v1270
        %v2199 = vmul.f32 %v2191, %v1270
        %v2200 = vmul.f32 %v2192, %v1270
        %v2201 = vmul.f32 %v2193, %v1270
        %v2202 = vmul.f32 %v2194, %v1270
        %v2203 = vmul.f32 %v2195, %v1270
        %v2204 = vsel %vm561, %v2196, 0.0
        %2205 = vadd.xlane.f32.xlu0 %v2204
        %v2206 = vpop.xlane.xlu0 %2205
        %v2207 = vsel %vm561, %v2197, 0.0
        %2208 = vadd.xlane.f32.xlu0 %v2207
        %v2209 = vpop.xlane.xlu0 %2208
        %v2210 = vsel %vm561, %v2198, 0.0
        %2211 = vadd.xlane.f32.xlu0 %v2210
        %v2212 = vpop.xlane.xlu0 %2211
        %v2213 = vsel %vm561, %v2199, 0.0
        %2214 = vadd.xlane.f32.xlu0 %v2213
        %v2215 = vpop.xlane.xlu0 %2214
        %v2216 = vsel %vm561, %v2200, 0.0
        %2217 = vadd.xlane.f32.xlu0 %v2216
        %v2218 = vpop.xlane.xlu0 %2217
        %v2219 = vsel %vm561, %v2201, 0.0
        %2220 = vadd.xlane.f32.xlu0 %v2219
        %v2221 = vpop.xlane.xlu0 %2220
        %v2222 = vsel %vm561, %v2202, 0.0
        %2223 = vadd.xlane.f32.xlu0 %v2222
        %v2224 = vpop.xlane.xlu0 %2223
        %v2225 = vsel %vm561, %v2203, 0.0
        %2226 = vadd.xlane.f32.xlu0 %v2225
        %v2227 = vpop.xlane.xlu0 %2226
        %v2228 = vadd.f32 %v2206, %v1303
        %v2229 = vadd.f32 %v2209, %v1303
        %v2230 = vadd.f32 %v2212, %v1303
        %v2231 = vadd.f32 %v2215, %v1303
        %v2232 = vadd.f32 %v2218, %v1303
        %v2233 = vadd.f32 %v2221, %v1303
        %v2234 = vadd.f32 %v2224, %v1303
        %v2235 = vadd.f32 %v2227, %v1303
        %v2236 = vsub.f32 0.0, %v2228
        %v2237 = vsub.f32 0.0, %v2229
        %v2238 = vsub.f32 0.0, %v2230
        %v2239 = vsub.f32 0.0, %v2231
        %v2240 = vsub.f32 0.0, %v2232
        %v2241 = vsub.f32 0.0, %v2233
        %v2242 = vsub.f32 0.0, %v2234
        %v2243 = vsub.f32 0.0, %v2235
        %v2244 = vmul.f32 %v2236, 1.442695
        %v2245 = vpow.pop %v2244
        %v2246 = vmul.f32 %v2237, 1.442695
        %v2247 = vpow.pop %v2246
        %v2248 = vmul.f32 %v2238, 1.442695
        %v2249 = vpow.pop %v2248
        %v2250 = vmul.f32 %v2239, 1.442695
        %v2251 = vpow.pop %v2250
        %v2252 = vmul.f32 %v2240, 1.442695
        %v2253 = vpow.pop %v2252
        %v2254 = vmul.f32 %v2241, 1.442695
        %v2255 = vpow.pop %v2254
        %v2256 = vmul.f32 %v2242, 1.442695
        %v2257 = vpow.pop %v2256
        %v2258 = vmul.f32 %v2243, 1.442695
        %v2259 = vpow.pop %v2258
        %v2260 = vadd.f32 %v2245, 1.0
        %v2261 = vadd.f32 %v2247, 1.0
        %v2262 = vadd.f32 %v2249, 1.0
        %v2263 = vadd.f32 %v2251, 1.0
        %v2264 = vadd.f32 %v2253, 1.0
        %v2265 = vadd.f32 %v2255, 1.0
        %v2266 = vadd.f32 %v2257, 1.0
        %v2267 = vadd.f32 %v2259, 1.0
        %v2268 = vrcp.pop %v2260
        %v2269 = vmul.f32 1.0, %v2268
        %v2270 = vrcp.pop %v2261
        %v2271 = vmul.f32 1.0, %v2270
        %v2272 = vrcp.pop %v2262
        %v2273 = vmul.f32 1.0, %v2272
        %v2274 = vrcp.pop %v2263
        %v2275 = vmul.f32 1.0, %v2274
        %v2276 = vrcp.pop %v2264
        %v2277 = vmul.f32 1.0, %v2276
        %v2278 = vrcp.pop %v2265
        %v2279 = vmul.f32 1.0, %v2278
        %v2280 = vrcp.pop %v2266
        %v2281 = vmul.f32 1.0, %v2280
        %v2282 = vrcp.pop %v2267
        %v2283 = vmul.f32 1.0, %v2282
        %s2284 = scalar_lea.vmem %s270, 64
        %2285 = vst.msk [vmem:[%s2284] sm:$0xff] %vm1360, %v2269
        %2286 = vst.msk [vmem:[%s2284 + $0x8] sm:$0xff] %vm1360, %v2271
        %2287 = vst.msk [vmem:[%s2284 + $0x10] sm:$0xff] %vm1360, %v2273
        %2288 = vst.msk [vmem:[%s2284 + $0x18] sm:$0xff] %vm1360, %v2275
        %2289 = vst.msk [vmem:[%s2284 + $0x20] sm:$0xff] %vm1360, %v2277
        %2290 = vst.msk [vmem:[%s2284 + $0x28] sm:$0xff] %vm1360, %v2279
        %2291 = vst.msk [vmem:[%s2284 + $0x30] sm:$0xff] %vm1360, %v2281
        %2292 = vst.msk [vmem:[%s2284 + $0x38] sm:$0xff] %vm1360, %v2283
        %s2293 = smul.u32 2, %s17
        %p2294 = scmp.lt.s32.totalorder %s2293, 3
        %s2295 = scalar_select %p2294, %s2293, 3
        %s2296 = smul.addr %s2295, 8
        %s2297 = smul.addr %s2296, 8
        %s2298 = scalar_lea.vmem %s5, %s2297
        // Predicated region
        $region45: #{filtration_forward.1} parent=39 // pred_check
          %p2299 = pneg %p150
        $region46: #{filtration_forward.1} parent=39 // pred_check_branch
          %2301 = sbr.rel (%p2299) target = $region48
        $region47: #{filtration_forward.1} parent=39 // pred_region
          %s2302 = smul.u32 2, %s17
        $region48: #{filtration_forward.1} parent=39 // pred_fallthru
          _
      $region40: #{filtration_forward.1} parent=5 // pred_fallthru
        _
      %p2303 = scmp.le.s32.totalorder 2, %s12
      // Predicated region
      $region49: #{filtration_forward.1} parent=5 // pred_check
        %p2304 = pneg %p2303
      $region50: #{filtration_forward.1} parent=5 // pred_check_branch
        %2306 = sbr.rel (%p2304) target = $region52
      $region51: #{filtration_forward.1} parent=5 // pred_region
        %s2307 = ssub.s32 %s12, 2
        // Predicated region
        $region53: #{filtration_forward.1} parent=51 // pred_check
          %p2308 = pneg %p156
        $region54: #{filtration_forward.1} parent=51 // pred_check_branch
          %2310 = sbr.rel (%p2308) target = $region56
        $region55: #{filtration_forward.1} parent=51 // pred_region
          %s2311 = smul.u32 2, %s18
          %p2312 = scmp.lt.s32.totalorder %s2311, 3
          %s2313 = scalar_select %p2312, %s2311, 3
          %s2314 = smul.addr %s2313, 8
          %s2315 = smul.addr %s2314, 8
          %s2316 = scalar_lea.vmem %s5, %s2315
        $region56: #{filtration_forward.1} parent=51 // pred_fallthru
          _
      $region52: #{filtration_forward.1} parent=5 // pred_fallthru
        _
    $region6: #{filtration_forward.1} parent=1 // loop_footer
      %s16 = sadd.s32 1, %s12
    $region7: #{filtration_forward.1} parent=1 // loop_footer_branch
      %11 = sbr.rel target = $region3
    $region8: #{filtration_forward.1} parent=1 // loop_exit
      _
    %2317 = vsyncpa [#allocation4], 1
    %s2318 = scalar_lea.sflag [#allocation4], 1
    %2319 = vsyncpa %s2318, 1

</llo_original>
